<compile_context>
chip_gen: v7x
topology: tpu7x:2x2x1
jax: 0.10.0
libtpu: 0.0.40
codegen_flags: <defaults>
</compile_context>

<pallas_src>
import functools

import jax
import jax.numpy as jnp
from jax.experimental import pallas as pl
from jax.experimental.pallas import tpu as pltpu


# ----------------------------------------------------------------------------
# Fused TextCNN forward kernel
# ----------------------------------------------------------------------------
def _textcnn_kernel(ids_ref, emb_ref, w3_ref, b3_ref, w4_ref, b4_ref,
                    w5_ref, b5_ref, fcw_ref, fcb_ref, out_ref, *, B, T):
    # ids_ref: (B*T, 1) int32 token ids
    # emb_ref: (V+1, E) f32 embedding table (row 0 == 0, padding_idx=0)
    # wK_ref:  (K, E, C) f32 conv weights (torch layout (C,1,K,E) transposed)
    # bK_ref:  (1, C)    f32 conv bias
    # fcw_ref: (3C, L)   f32 FC weight (transposed vs torch Linear)
    # fcb_ref: (1, L)    f32 FC bias
    # out_ref: (B, L)    f32 sigmoid outputs
    V1, E = emb_ref.shape
    C = w3_ref.shape[2]

    # --- Embedding lookup as a one-hot matmul (MXU, fully VMEM-resident) ----
    ids = ids_ref[...]                                               # (B*T, 1)
    lane_iota = jax.lax.broadcasted_iota(jnp.int32, (B * T, V1), 1)
    onehot = (lane_iota == ids).astype(jnp.float32)                  # (B*T, V+1)
    x2d = jnp.dot(onehot, emb_ref[...],
                  preferred_element_type=jnp.float32)                # (B*T, E)

    # --- Conv(K, E) + ReLU + max-over-time pool, as K shifted matmuls -------
    def conv_block(w_ref, b_ref):
        K = w_ref.shape[0]
        Tk = T - K + 1
        # tap k = 0
        y = jnp.dot(x2d, w_ref[0],
                    preferred_element_type=jnp.float32).reshape(B, T, C)
        acc = y[:, 0:Tk, :]                                          # (B, Tk, C)
        # remaining taps, statically unrolled
        for k in range(1, K):
            y = jnp.dot(x2d, w_ref[k],
                        preferred_element_type=jnp.float32).reshape(B, T, C)
            acc = acc + y[:, k:k + Tk, :]
        pooled = jnp.max(acc, axis=1)                                # (B, C)
        # bias-add and ReLU commute with max-over-time -> apply once here
        return jnp.maximum(pooled + b_ref[...], 0.0)                 # (B, C)

    p3 = conv_block(w3_ref, b3_ref)
    p4 = conv_block(w4_ref, b4_ref)
    p5 = conv_block(w5_ref, b5_ref)

    # --- Linear on concat([p3, p4, p5]) as three sliced matmuls + sigmoid ---
    logits = (jnp.dot(p3, fcw_ref[0:C, :], preferred_element_type=jnp.float32)
              + jnp.dot(p4, fcw_ref[C:2 * C, :], preferred_element_type=jnp.float32)
              + jnp.dot(p5, fcw_ref[2 * C:3 * C, :], preferred_element_type=jnp.float32)
              + fcb_ref[...])
    out_ref[...] = jax.nn.sigmoid(logits)


@jax.jit
def textcnn_forward(x_ids, params):
    B, T = x_ids.shape
    L = params["fc_w"].shape[1]
    ids2d = x_ids.reshape(B * T, 1).astype(jnp.int32)   # trivial host-side glue
    vmem = pl.BlockSpec(memory_space=pltpu.MemorySpace.VMEM)
    kernel = functools.partial(_textcnn_kernel, B=B, T=T)
    return pl.pallas_call(
        kernel,
        out_shape=jax.ShapeDtypeStruct((B, L), jnp.float32),
        in_specs=[vmem] * 10,
        out_specs=vmem,
    )(ids2d, params["emb"],
      params["w3"], params["b3"],
      params["w4"], params["b4"],
      params["w5"], params["b5"],
      params["fc_w"], params["fc_b"])


# ----------------------------------------------------------------------------
# Pure-JAX reference (mirrors the PyTorch forward exactly) for verification
# ----------------------------------------------------------------------------
def textcnn_reference(x_ids, params):
    emb = jnp.take(params["emb"], x_ids, axis=0)                     # (B, T, E)
    T = emb.shape[1]
    feats = []
    for K in (3, 4, 5):
        w = params[f"w{K}"]                                          # (K, E, C)
        b = params[f"b{K}"]                                          # (1, C)
        Tk = T - K + 1
        conv = sum(jnp.einsum("bte,ec->btc", emb[:, k:k + Tk, :], w[k])
                   for k in range(K)) + b                            # (B, Tk, C)
        act = jax.nn.relu(conv)
        feats.append(jnp.max(act, axis=1))                           # (B, C)
    feat = jnp.concatenate(feats, axis=1)                            # (B, 3C)
    return jax.nn.sigmoid(feat @ params["fc_w"] + params["fc_b"])


# ----------------------------------------------------------------------------
# Deterministic parameter construction
# TODO(synk): pretrained word2vec weights (read_pkl) are replaced by a random
#             embedding table with a zero padding row (padding_idx=0).
# ----------------------------------------------------------------------------
def make_params(key, vocab, emb_size, kernel_num, kernel_sizes, num_label):
    ks = jax.random.split(key, 2 * len(kernel_sizes) + 3)
    scale = 0.1
    emb = scale * jax.random.normal(ks[0], (vocab + 1, emb_size), jnp.float32)
    emb = emb.at[0].set(0.0)                                         # padding_idx=0
    params = {"emb": emb}
    idx = 1
    for K in kernel_sizes:
        params[f"w{K}"] = scale * jax.random.normal(
            ks[idx], (K, emb_size, kernel_num), jnp.float32); idx += 1
        params[f"b{K}"] = scale * jax.random.normal(
            ks[idx], (1, kernel_num), jnp.float32); idx += 1
    params["fc_w"] = scale * jax.random.normal(
        ks[idx], (len(kernel_sizes) * kernel_num, num_label), jnp.float32); idx += 1
    params["fc_b"] = scale * jax.random.normal(
        ks[idx], (1, num_label), jnp.float32)
    return params


if __name__ == "__main__":
    B, T = 2, 16         # batch, sequence length (>= max kernel size 5)
    E = 16               # emb_size
    C = 16               # kernel_num (small example size)
    L = 4                # num_label
    VOCAB = 50
    KS = (3, 4, 5)

    key = jax.random.PRNGKey(0)
    k_par, k_ids = jax.random.split(key)
    params = make_params(k_par, VOCAB, E, C, KS, L)
    x_ids = jax.random.randint(k_ids, (B, T), 1, VOCAB + 1, dtype=jnp.int32)

    out = jax.block_until_ready(textcnn_forward(x_ids, params))
    ref = jax.block_until_ready(textcnn_reference(x_ids, params))

    assert out.shape == (B, L)
    assert bool(jnp.all(jnp.isfinite(out)))
    assert bool(jnp.all((out > 0.0) & (out < 1.0)))      # sigmoid range
    assert float(jnp.max(jnp.abs(out - ref))) < 1e-3     # matches reference
    print("KERNEL_OK")
</pallas_src>

<mosaic_0001>
module attributes {stable_mosaic.version = 11 : i64} {
  func.func @_textcnn_kernel(%arg0: memref<32x1xi32, #tpu.memory_space<vmem>>, %arg1: memref<51x16xf32, #tpu.memory_space<vmem>>, %arg2: memref<3x16x16xf32, #tpu.memory_space<vmem>>, %arg3: memref<1x16xf32, #tpu.memory_space<vmem>>, %arg4: memref<4x16x16xf32, #tpu.memory_space<vmem>>, %arg5: memref<1x16xf32, #tpu.memory_space<vmem>>, %arg6: memref<5x16x16xf32, #tpu.memory_space<vmem>>, %arg7: memref<1x16xf32, #tpu.memory_space<vmem>>, %arg8: memref<48x4xf32, #tpu.memory_space<vmem>>, %arg9: memref<1x4xf32, #tpu.memory_space<vmem>>, %arg10: memref<2x4xf32, #tpu.memory_space<vmem>>) attributes {dimension_semantics = [], scalar_prefetch = 0 : i64, scratch_operands = 0 : i64, tpu.core_type = #tpu.core_type<tc>} {
    %c0 = arith.constant 0 : index
    %c0_0 = arith.constant 0 : index
    %0 = vector.load %arg0[%c0, %c0_0] : memref<32x1xi32, #tpu.memory_space<vmem>>, vector<32x1xi32>
    %1 = tpu.iota {dimensions = array<i32: 1>} : vector<32x51xi32>
    %2 = vector.broadcast %0 : vector<32x1xi32> to vector<32x51xi32>
    %3 = arith.cmpi eq, %1, %2 : vector<32x51xi32>
    %4 = arith.extui %3 : vector<32x51xi1> to vector<32x51xi32>
    %5 = arith.sitofp %4 : vector<32x51xi32> to vector<32x51xf32>
    %c0_1 = arith.constant 0 : index
    %c0_2 = arith.constant 0 : index
    %6 = vector.load %arg1[%c0_1, %c0_2] : memref<51x16xf32, #tpu.memory_space<vmem>>, vector<51x16xf32>
    %cst = arith.constant dense<0.000000e+00> : vector<32x16xf32>
    %7 = tpu.matmul %5, %6, %cst {dimension_numbers = #tpu.dot_dimension_numbers<[1], [0], [0], [1], [0, 0, 1, 1], [], []>} : vector<32x51xf32>, vector<51x16xf32>, vector<32x16xf32> -> vector<32x16xf32>
    %c0_3 = arith.constant 0 : index
    %c0_4 = arith.constant 0 : index
    %c0_5 = arith.constant 0 : index
    %8 = vector.load %arg2[%c0_3, %c0_4, %c0_5] : memref<3x16x16xf32, #tpu.memory_space<vmem>>, vector<1x16x16xf32>
    %9 = vector.shape_cast %8 : vector<1x16x16xf32> to vector<16x16xf32>
    %cst_6 = arith.constant dense<0.000000e+00> : vector<32x16xf32>
    %10 = tpu.matmul %7, %9, %cst_6 {dimension_numbers = #tpu.dot_dimension_numbers<[1], [0], [0], [1], [0, 0, 1, 1], [], []>} : vector<32x16xf32>, vector<16x16xf32>, vector<32x16xf32> -> vector<32x16xf32>
    %11 = vector.shape_cast %10 : vector<32x16xf32> to vector<2x16x16xf32>
    %12 = vector.extract_strided_slice %11 {offsets = [0, 0, 0], sizes = [2, 14, 16], strides = [1, 1, 1]} : vector<2x16x16xf32> to vector<2x14x16xf32>
    %c1 = arith.constant 1 : index
    %c0_7 = arith.constant 0 : index
    %c0_8 = arith.constant 0 : index
    %13 = vector.load %arg2[%c1, %c0_7, %c0_8] : memref<3x16x16xf32, #tpu.memory_space<vmem>>, vector<1x16x16xf32>
    %14 = vector.shape_cast %13 : vector<1x16x16xf32> to vector<16x16xf32>
    %cst_9 = arith.constant dense<0.000000e+00> : vector<32x16xf32>
    %15 = tpu.matmul %7, %14, %cst_9 {dimension_numbers = #tpu.dot_dimension_numbers<[1], [0], [0], [1], [0, 0, 1, 1], [], []>} : vector<32x16xf32>, vector<16x16xf32>, vector<32x16xf32> -> vector<32x16xf32>
    %16 = vector.shape_cast %15 : vector<32x16xf32> to vector<2x16x16xf32>
    %17 = vector.extract_strided_slice %16 {offsets = [0, 1, 0], sizes = [2, 14, 16], strides = [1, 1, 1]} : vector<2x16x16xf32> to vector<2x14x16xf32>
    %18 = arith.addf %12, %17 : vector<2x14x16xf32>
    %c2 = arith.constant 2 : index
    %c0_10 = arith.constant 0 : index
    %c0_11 = arith.constant 0 : index
    %19 = vector.load %arg2[%c2, %c0_10, %c0_11] : memref<3x16x16xf32, #tpu.memory_space<vmem>>, vector<1x16x16xf32>
    %20 = vector.shape_cast %19 : vector<1x16x16xf32> to vector<16x16xf32>
    %cst_12 = arith.constant dense<0.000000e+00> : vector<32x16xf32>
    %21 = tpu.matmul %7, %20, %cst_12 {dimension_numbers = #tpu.dot_dimension_numbers<[1], [0], [0], [1], [0, 0, 1, 1], [], []>} : vector<32x16xf32>, vector<16x16xf32>, vector<32x16xf32> -> vector<32x16xf32>
    %22 = vector.shape_cast %21 : vector<32x16xf32> to vector<2x16x16xf32>
    %23 = vector.extract_strided_slice %22 {offsets = [0, 2, 0], sizes = [2, 14, 16], strides = [1, 1, 1]} : vector<2x16x16xf32> to vector<2x14x16xf32>
    %24 = arith.addf %18, %23 : vector<2x14x16xf32>
    %cst_13 = arith.constant dense<0xFF800000> : vector<2x16xf32>
    %25 = vector.multi_reduction <maximumf>, %24, %cst_13 [1] : vector<2x14x16xf32> to vector<2x16xf32>
    %c0_14 = arith.constant 0 : index
    %c0_15 = arith.constant 0 : index
    %26 = vector.load %arg3[%c0_14, %c0_15] : memref<1x16xf32, #tpu.memory_space<vmem>>, vector<1x16xf32>
    %27 = vector.broadcast %26 : vector<1x16xf32> to vector<2x16xf32>
    %28 = arith.addf %25, %27 : vector<2x16xf32>
    %cst_16 = arith.constant 0.000000e+00 : f32
    %29 = vector.broadcast %cst_16 : f32 to vector<2x16xf32>
    %30 = arith.maximumf %28, %29 : vector<2x16xf32>
    %c0_17 = arith.constant 0 : index
    %c0_18 = arith.constant 0 : index
    %c0_19 = arith.constant 0 : index
    %31 = vector.load %arg4[%c0_17, %c0_18, %c0_19] : memref<4x16x16xf32, #tpu.memory_space<vmem>>, vector<1x16x16xf32>
    %32 = vector.shape_cast %31 : vector<1x16x16xf32> to vector<16x16xf32>
    %cst_20 = arith.constant dense<0.000000e+00> : vector<32x16xf32>
    %33 = tpu.matmul %7, %32, %cst_20 {dimension_numbers = #tpu.dot_dimension_numbers<[1], [0], [0], [1], [0, 0, 1, 1], [], []>} : vector<32x16xf32>, vector<16x16xf32>, vector<32x16xf32> -> vector<32x16xf32>
    %34 = vector.shape_cast %33 : vector<32x16xf32> to vector<2x16x16xf32>
    %35 = vector.extract_strided_slice %34 {offsets = [0, 0, 0], sizes = [2, 13, 16], strides = [1, 1, 1]} : vector<2x16x16xf32> to vector<2x13x16xf32>
    %c1_21 = arith.constant 1 : index
    %c0_22 = arith.constant 0 : index
    %c0_23 = arith.constant 0 : index
    %36 = vector.load %arg4[%c1_21, %c0_22, %c0_23] : memref<4x16x16xf32, #tpu.memory_space<vmem>>, vector<1x16x16xf32>
    %37 = vector.shape_cast %36 : vector<1x16x16xf32> to vector<16x16xf32>
    %cst_24 = arith.constant dense<0.000000e+00> : vector<32x16xf32>
    %38 = tpu.matmul %7, %37, %cst_24 {dimension_numbers = #tpu.dot_dimension_numbers<[1], [0], [0], [1], [0, 0, 1, 1], [], []>} : vector<32x16xf32>, vector<16x16xf32>, vector<32x16xf32> -> vector<32x16xf32>
    %39 = vector.shape_cast %38 : vector<32x16xf32> to vector<2x16x16xf32>
    %40 = vector.extract_strided_slice %39 {offsets = [0, 1, 0], sizes = [2, 13, 16], strides = [1, 1, 1]} : vector<2x16x16xf32> to vector<2x13x16xf32>
    %41 = arith.addf %35, %40 : vector<2x13x16xf32>
    %c2_25 = arith.constant 2 : index
    %c0_26 = arith.constant 0 : index
    %c0_27 = arith.constant 0 : index
    %42 = vector.load %arg4[%c2_25, %c0_26, %c0_27] : memref<4x16x16xf32, #tpu.memory_space<vmem>>, vector<1x16x16xf32>
    %43 = vector.shape_cast %42 : vector<1x16x16xf32> to vector<16x16xf32>
    %cst_28 = arith.constant dense<0.000000e+00> : vector<32x16xf32>
    %44 = tpu.matmul %7, %43, %cst_28 {dimension_numbers = #tpu.dot_dimension_numbers<[1], [0], [0], [1], [0, 0, 1, 1], [], []>} : vector<32x16xf32>, vector<16x16xf32>, vector<32x16xf32> -> vector<32x16xf32>
    %45 = vector.shape_cast %44 : vector<32x16xf32> to vector<2x16x16xf32>
    %46 = vector.extract_strided_slice %45 {offsets = [0, 2, 0], sizes = [2, 13, 16], strides = [1, 1, 1]} : vector<2x16x16xf32> to vector<2x13x16xf32>
    %47 = arith.addf %41, %46 : vector<2x13x16xf32>
    %c3 = arith.constant 3 : index
    %c0_29 = arith.constant 0 : index
    %c0_30 = arith.constant 0 : index
    %48 = vector.load %arg4[%c3, %c0_29, %c0_30] : memref<4x16x16xf32, #tpu.memory_space<vmem>>, vector<1x16x16xf32>
    %49 = vector.shape_cast %48 : vector<1x16x16xf32> to vector<16x16xf32>
    %cst_31 = arith.constant dense<0.000000e+00> : vector<32x16xf32>
    %50 = tpu.matmul %7, %49, %cst_31 {dimension_numbers = #tpu.dot_dimension_numbers<[1], [0], [0], [1], [0, 0, 1, 1], [], []>} : vector<32x16xf32>, vector<16x16xf32>, vector<32x16xf32> -> vector<32x16xf32>
    %51 = vector.shape_cast %50 : vector<32x16xf32> to vector<2x16x16xf32>
    %52 = vector.extract_strided_slice %51 {offsets = [0, 3, 0], sizes = [2, 13, 16], strides = [1, 1, 1]} : vector<2x16x16xf32> to vector<2x13x16xf32>
    %53 = arith.addf %47, %52 : vector<2x13x16xf32>
    %cst_32 = arith.constant dense<0xFF800000> : vector<2x16xf32>
    %54 = vector.multi_reduction <maximumf>, %53, %cst_32 [1] : vector<2x13x16xf32> to vector<2x16xf32>
    %c0_33 = arith.constant 0 : index
    %c0_34 = arith.constant 0 : index
    %55 = vector.load %arg5[%c0_33, %c0_34] : memref<1x16xf32, #tpu.memory_space<vmem>>, vector<1x16xf32>
    %56 = vector.broadcast %55 : vector<1x16xf32> to vector<2x16xf32>
    %57 = arith.addf %54, %56 : vector<2x16xf32>
    %cst_35 = arith.constant 0.000000e+00 : f32
    %58 = vector.broadcast %cst_35 : f32 to vector<2x16xf32>
    %59 = arith.maximumf %57, %58 : vector<2x16xf32>
    %c0_36 = arith.constant 0 : index
    %c0_37 = arith.constant 0 : index
    %c0_38 = arith.constant 0 : index
    %60 = vector.load %arg6[%c0_36, %c0_37, %c0_38] : memref<5x16x16xf32, #tpu.memory_space<vmem>>, vector<1x16x16xf32>
    %61 = vector.shape_cast %60 : vector<1x16x16xf32> to vector<16x16xf32>
    %cst_39 = arith.constant dense<0.000000e+00> : vector<32x16xf32>
    %62 = tpu.matmul %7, %61, %cst_39 {dimension_numbers = #tpu.dot_dimension_numbers<[1], [0], [0], [1], [0, 0, 1, 1], [], []>} : vector<32x16xf32>, vector<16x16xf32>, vector<32x16xf32> -> vector<32x16xf32>
    %63 = vector.shape_cast %62 : vector<32x16xf32> to vector<2x16x16xf32>
    %64 = vector.extract_strided_slice %63 {offsets = [0, 0, 0], sizes = [2, 12, 16], strides = [1, 1, 1]} : vector<2x16x16xf32> to vector<2x12x16xf32>
    %c1_40 = arith.constant 1 : index
    %c0_41 = arith.constant 0 : index
    %c0_42 = arith.constant 0 : index
    %65 = vector.load %arg6[%c1_40, %c0_41, %c0_42] : memref<5x16x16xf32, #tpu.memory_space<vmem>>, vector<1x16x16xf32>
    %66 = vector.shape_cast %65 : vector<1x16x16xf32> to vector<16x16xf32>
    %cst_43 = arith.constant dense<0.000000e+00> : vector<32x16xf32>
    %67 = tpu.matmul %7, %66, %cst_43 {dimension_numbers = #tpu.dot_dimension_numbers<[1], [0], [0], [1], [0, 0, 1, 1], [], []>} : vector<32x16xf32>, vector<16x16xf32>, vector<32x16xf32> -> vector<32x16xf32>
    %68 = vector.shape_cast %67 : vector<32x16xf32> to vector<2x16x16xf32>
    %69 = vector.extract_strided_slice %68 {offsets = [0, 1, 0], sizes = [2, 12, 16], strides = [1, 1, 1]} : vector<2x16x16xf32> to vector<2x12x16xf32>
    %70 = arith.addf %64, %69 : vector<2x12x16xf32>
    %c2_44 = arith.constant 2 : index
    %c0_45 = arith.constant 0 : index
    %c0_46 = arith.constant 0 : index
    %71 = vector.load %arg6[%c2_44, %c0_45, %c0_46] : memref<5x16x16xf32, #tpu.memory_space<vmem>>, vector<1x16x16xf32>
    %72 = vector.shape_cast %71 : vector<1x16x16xf32> to vector<16x16xf32>
    %cst_47 = arith.constant dense<0.000000e+00> : vector<32x16xf32>
    %73 = tpu.matmul %7, %72, %cst_47 {dimension_numbers = #tpu.dot_dimension_numbers<[1], [0], [0], [1], [0, 0, 1, 1], [], []>} : vector<32x16xf32>, vector<16x16xf32>, vector<32x16xf32> -> vector<32x16xf32>
    %74 = vector.shape_cast %73 : vector<32x16xf32> to vector<2x16x16xf32>
    %75 = vector.extract_strided_slice %74 {offsets = [0, 2, 0], sizes = [2, 12, 16], strides = [1, 1, 1]} : vector<2x16x16xf32> to vector<2x12x16xf32>
    %76 = arith.addf %70, %75 : vector<2x12x16xf32>
    %c3_48 = arith.constant 3 : index
    %c0_49 = arith.constant 0 : index
    %c0_50 = arith.constant 0 : index
    %77 = vector.load %arg6[%c3_48, %c0_49, %c0_50] : memref<5x16x16xf32, #tpu.memory_space<vmem>>, vector<1x16x16xf32>
    %78 = vector.shape_cast %77 : vector<1x16x16xf32> to vector<16x16xf32>
    %cst_51 = arith.constant dense<0.000000e+00> : vector<32x16xf32>
    %79 = tpu.matmul %7, %78, %cst_51 {dimension_numbers = #tpu.dot_dimension_numbers<[1], [0], [0], [1], [0, 0, 1, 1], [], []>} : vector<32x16xf32>, vector<16x16xf32>, vector<32x16xf32> -> vector<32x16xf32>
    %80 = vector.shape_cast %79 : vector<32x16xf32> to vector<2x16x16xf32>
    %81 = vector.extract_strided_slice %80 {offsets = [0, 3, 0], sizes = [2, 12, 16], strides = [1, 1, 1]} : vector<2x16x16xf32> to vector<2x12x16xf32>
    %82 = arith.addf %76, %81 : vector<2x12x16xf32>
    %c4 = arith.constant 4 : index
    %c0_52 = arith.constant 0 : index
    %c0_53 = arith.constant 0 : index
    %83 = vector.load %arg6[%c4, %c0_52, %c0_53] : memref<5x16x16xf32, #tpu.memory_space<vmem>>, vector<1x16x16xf32>
    %84 = vector.shape_cast %83 : vector<1x16x16xf32> to vector<16x16xf32>
    %cst_54 = arith.constant dense<0.000000e+00> : vector<32x16xf32>
    %85 = tpu.matmul %7, %84, %cst_54 {dimension_numbers = #tpu.dot_dimension_numbers<[1], [0], [0], [1], [0, 0, 1, 1], [], []>} : vector<32x16xf32>, vector<16x16xf32>, vector<32x16xf32> -> vector<32x16xf32>
    %86 = vector.shape_cast %85 : vector<32x16xf32> to vector<2x16x16xf32>
    %87 = vector.extract_strided_slice %86 {offsets = [0, 4, 0], sizes = [2, 12, 16], strides = [1, 1, 1]} : vector<2x16x16xf32> to vector<2x12x16xf32>
    %88 = arith.addf %82, %87 : vector<2x12x16xf32>
    %cst_55 = arith.constant dense<0xFF800000> : vector<2x16xf32>
    %89 = vector.multi_reduction <maximumf>, %88, %cst_55 [1] : vector<2x12x16xf32> to vector<2x16xf32>
    %c0_56 = arith.constant 0 : index
    %c0_57 = arith.constant 0 : index
    %90 = vector.load %arg7[%c0_56, %c0_57] : memref<1x16xf32, #tpu.memory_space<vmem>>, vector<1x16xf32>
    %91 = vector.broadcast %90 : vector<1x16xf32> to vector<2x16xf32>
    %92 = arith.addf %89, %91 : vector<2x16xf32>
    %cst_58 = arith.constant 0.000000e+00 : f32
    %93 = vector.broadcast %cst_58 : f32 to vector<2x16xf32>
    %94 = arith.maximumf %92, %93 : vector<2x16xf32>
    %c0_59 = arith.constant 0 : index
    %c0_60 = arith.constant 0 : index
    %95 = vector.load %arg8[%c0_59, %c0_60] : memref<48x4xf32, #tpu.memory_space<vmem>>, vector<16x4xf32>
    %cst_61 = arith.constant dense<0.000000e+00> : vector<2x4xf32>
    %96 = tpu.matmul %30, %95, %cst_61 {dimension_numbers = #tpu.dot_dimension_numbers<[1], [0], [0], [1], [0, 0, 1, 1], [], []>} : vector<2x16xf32>, vector<16x4xf32>, vector<2x4xf32> -> vector<2x4xf32>
    %c16 = arith.constant 16 : index
    %c0_62 = arith.constant 0 : index
    %97 = vector.load %arg8[%c16, %c0_62] : memref<48x4xf32, #tpu.memory_space<vmem>>, vector<16x4xf32>
    %cst_63 = arith.constant dense<0.000000e+00> : vector<2x4xf32>
    %98 = tpu.matmul %59, %97, %cst_63 {dimension_numbers = #tpu.dot_dimension_numbers<[1], [0], [0], [1], [0, 0, 1, 1], [], []>} : vector<2x16xf32>, vector<16x4xf32>, vector<2x4xf32> -> vector<2x4xf32>
    %99 = arith.addf %96, %98 : vector<2x4xf32>
    %c32 = arith.constant 32 : index
    %c0_64 = arith.constant 0 : index
    %100 = vector.load %arg8[%c32, %c0_64] : memref<48x4xf32, #tpu.memory_space<vmem>>, vector<16x4xf32>
    %cst_65 = arith.constant dense<0.000000e+00> : vector<2x4xf32>
    %101 = tpu.matmul %94, %100, %cst_65 {dimension_numbers = #tpu.dot_dimension_numbers<[1], [0], [0], [1], [0, 0, 1, 1], [], []>} : vector<2x16xf32>, vector<16x4xf32>, vector<2x4xf32> -> vector<2x4xf32>
    %102 = arith.addf %99, %101 : vector<2x4xf32>
    %c0_66 = arith.constant 0 : index
    %c0_67 = arith.constant 0 : index
    %103 = vector.load %arg9[%c0_66, %c0_67] : memref<1x4xf32, #tpu.memory_space<vmem>>, vector<1x4xf32>
    %104 = vector.broadcast %103 : vector<1x4xf32> to vector<2x4xf32>
    %105 = arith.addf %102, %104 : vector<2x4xf32>
    %106 = arith.negf %105 : vector<2x4xf32>
    %107 = math.exp %106 : vector<2x4xf32>
    %cst_68 = arith.constant 1.000000e+00 : f32
    %108 = vector.broadcast %cst_68 : f32 to vector<2x4xf32>
    %109 = arith.addf %108, %107 : vector<2x4xf32>
    %110 = arith.divf %108, %109 : vector<2x4xf32>
    %c0_69 = arith.constant 0 : index
    %c0_70 = arith.constant 0 : index
    %111 = vector.load %arg10[%c0_69, %c0_70] : memref<2x4xf32, #tpu.memory_space<vmem>>, vector<2x4xf32>
    tpu.vector_store %arg10[%c0_69, %c0_70], %110 {strides = array<i32>} : memref<2x4xf32, #tpu.memory_space<vmem>>, vector<2x4xf32>,
    return
  }
}

</mosaic_0001>

<llo_original>
// kernel: textcnn_forward.1
$region0: #{textcnn_forward.1}
  #allocation0 [shape = 'u32[]', space=smem, size = 0x4, offset = 0x4, fixed_abs, tag = 'smem constant byte address 0x4 - core index']
  #allocation1 [shape = 'u32[144,128]{1,0:T(1,128)}', space=vmem, size = 0x12000, scoped, tag = 'internal scratch']
  %s0 = inlined_call_operand.vmem [shape: s32[32,1], index: 0, kind: input, shape index: {}]
  %s1 = inlined_call_operand.vmem [shape: f32[51,16], index: 1, kind: input, shape index: {}]
  %s2 = inlined_call_operand.hbm [shape: f32[3,16,16], index: 2, kind: input, shape index: {}]
  %s3 = inlined_call_operand.vmem [shape: f32[1,16], index: 3, kind: input, shape index: {}]
  %s4 = inlined_call_operand.vmem [shape: f32[4,16,16], index: 4, kind: input, shape index: {}]
  %s5 = inlined_call_operand.hbm [shape: f32[1,16], index: 5, kind: input, shape index: {}]
  %s6 = inlined_call_operand.vmem [shape: f32[5,16,16], index: 6, kind: input, shape index: {}]
  %s7 = inlined_call_operand.vmem [shape: f32[1,16], index: 7, kind: input, shape index: {}]
  %s8 = inlined_call_operand.vmem [shape: f32[48,4], index: 8, kind: input, shape index: {}]
  %s9 = inlined_call_operand.vmem [shape: f32[1,4], index: 9, kind: input, shape index: {}]
  %s10 = inlined_call_operand.hbm [shape: f32[2,4], index: 10, kind: output, shape index: {}]
  %s11 = sld [smem:[#allocation0]]
  $region58: #{textcnn_forward.1} parent=0
    _
  %s13 = ssub.s32 1, %s11
  %s14 = scalar_select 0, %s13, %s11
  $region1: #{textcnn_forward.1} parent=0
    #allocation2 [shape = 'u8[24576]{0}', space=vmem, size = 0x6000, scoped, tag = 'input window, operand 2, single buffered']
    #allocation3 [shape = 's32[1]{0}', space=sflag, size = 0x4, scoped, tag = 'scoped memory for textcnn_forward.1']
    #allocation4 [shape = 's32[1]{0}', space=sflag, size = 0x4, scoped, tag = 'scoped memory for textcnn_forward.1']
    #allocation5 [shape = 'u8[512]{0}', space=vmem, size = 0x400, scoped, tag = 'input window, operand 5, single buffered']
    #allocation6 [shape = 's32[1]{0}', space=sflag, size = 0x4, scoped, tag = 'scoped memory for textcnn_forward.1']
    #allocation7 [shape = 'u8[1024]{0}', space=vmem, size = 0x400, scoped, tag = 'output window, operand 0, single buffered']
    %15 = vsyncpa [#allocation3], 0
    %16 = vsyncpa [#allocation6], 0
    %17 = vsyncpa [#allocation4], 0
    // Predicated region
    $region2: #{textcnn_forward.1} parent=1 // pred_check
      _
    $region3: #{textcnn_forward.1} parent=1 // pred_check_branch
      %19 = sbr.rel (0) target = $region5
    $region4: #{textcnn_forward.1} parent=1 // pred_region
      _
    $region5: #{textcnn_forward.1} parent=1 // pred_fallthru
      _
    // Predicated region
    $region6: #{textcnn_forward.1} parent=1 // pred_check
      _
    $region7: #{textcnn_forward.1} parent=1 // pred_check_branch
      %21 = sbr.rel (0) target = $region9
    $region8: #{textcnn_forward.1} parent=1 // pred_region
      _
    $region9: #{textcnn_forward.1} parent=1 // pred_fallthru
      _
    // Predicated region
    $region10: #{textcnn_forward.1} parent=1 // pred_check
      _
    $region11: #{textcnn_forward.1} parent=1 // pred_check_branch
      %23 = sbr.rel (0) target = $region13
    $region12: #{textcnn_forward.1} parent=1 // pred_region
      %s25 = ssub.s32 768, 768
      %26 = vsyncadd [#allocation3], %s25
      %s27 = sshll.u32 [#allocation2], 4
      %s28 = int_to_ptr.vmem [resolvable:$true] %s27
      %33 = dma.hbm_to_vmem [thread:$0]  %s2, 768, %s28, [#allocation3], 128, 128, 8
    $region13: #{textcnn_forward.1} parent=1 // pred_fallthru
      _
    // Predicated region
    $region14: #{textcnn_forward.1} parent=1 // pred_check
      _
    $region15: #{textcnn_forward.1} parent=1 // pred_check_branch
      %35 = sbr.rel (0) target = $region17
    $region16: #{textcnn_forward.1} parent=1 // pred_region
      _
    $region17: #{textcnn_forward.1} parent=1 // pred_fallthru
      _
    // Predicated region
    $region18: #{textcnn_forward.1} parent=1 // pred_check
      _
    $region19: #{textcnn_forward.1} parent=1 // pred_check_branch
      %37 = sbr.rel (0) target = $region21
    $region20: #{textcnn_forward.1} parent=1 // pred_region
      _
    $region21: #{textcnn_forward.1} parent=1 // pred_fallthru
      _
    // Predicated region
    $region22: #{textcnn_forward.1} parent=1 // pred_check
      _
    $region23: #{textcnn_forward.1} parent=1 // pred_check_branch
      %39 = sbr.rel (0) target = $region25
    $region24: #{textcnn_forward.1} parent=1 // pred_region
      %s41 = ssub.s32 16, 16
      %42 = vsyncadd [#allocation6], %s41
      %s44 = sshll.u32 [#allocation5], 4
      %s45 = int_to_ptr.vmem [resolvable:$true] %s44
      %47 = dma.hbm_to_vmem [thread:$0]  %s5, 16, %s45, [#allocation6]
    $region25: #{textcnn_forward.1} parent=1 // pred_fallthru
      _
    // Predicated region
    $region26: #{textcnn_forward.1} parent=1 // pred_check
      _
    $region27: #{textcnn_forward.1} parent=1 // pred_check_branch
      %49 = sbr.rel (0) target = $region29
    $region28: #{textcnn_forward.1} parent=1 // pred_region
      _
    $region29: #{textcnn_forward.1} parent=1 // pred_fallthru
      _
    // Predicated region
    $region30: #{textcnn_forward.1} parent=1 // pred_check
      _
    $region31: #{textcnn_forward.1} parent=1 // pred_check_branch
      %51 = sbr.rel (0) target = $region33
    $region32: #{textcnn_forward.1} parent=1 // pred_region
      _
    $region33: #{textcnn_forward.1} parent=1 // pred_fallthru
      _
    // Predicated region
    $region34: #{textcnn_forward.1} parent=1 // pred_check
      _
    $region35: #{textcnn_forward.1} parent=1 // pred_check_branch
      %53 = sbr.rel (0) target = $region37
    $region36: #{textcnn_forward.1} parent=1 // pred_region
      _
    $region37: #{textcnn_forward.1} parent=1 // pred_fallthru
      _
    // Predicated region
    $region38: #{textcnn_forward.1} parent=1 // pred_check
      _
    $region39: #{textcnn_forward.1} parent=1 // pred_check_branch
      %55 = sbr.rel (0) target = $region41
    $region40: #{textcnn_forward.1} parent=1 // pred_region
      _
    $region41: #{textcnn_forward.1} parent=1 // pred_fallthru
      _
    // Predicated region
    $region42: #{textcnn_forward.1} parent=1 // pred_check
      _
    $region43: #{textcnn_forward.1} parent=1 // pred_check_branch
      %57 = sbr.rel (0) target = $region45
    $region44: #{textcnn_forward.1} parent=1 // pred_region
      %58 = dma.done [#allocation3], 768
    $region45: #{textcnn_forward.1} parent=1 // pred_fallthru
      _
    // Predicated region
    $region46: #{textcnn_forward.1} parent=1 // pred_check
      _
    $region47: #{textcnn_forward.1} parent=1 // pred_check_branch
      %60 = sbr.rel (0) target = $region49
    $region48: #{textcnn_forward.1} parent=1 // pred_region
      %61 = dma.done [#allocation6], 16
    $region49: #{textcnn_forward.1} parent=1 // pred_fallthru
      _
    %v62 = vld [vmem:[%s0] sm:$0xff]
    %v63 = vld [vmem:[%s0 + $0x8] sm:$0xff]
    %v64 = vld [vmem:[%s0 + $0x10] sm:$0xff]
    %v65 = vld [vmem:[%s0 + $0x18] sm:$0xff]
    %v66 = vlaneseq
    %v67 = vand.u32 %v66, 127
    %68 = vset.pattern.permute.xlu0 0
    %69 = vperm.xlu0 %68, %v62
    %v70 = vpop.permute.xlu0 %69
    %71 = vset.pattern.permute.xlu0 0
    %72 = vperm.xlu0 %71, %v63
    %v73 = vpop.permute.xlu0 %72
    %74 = vset.pattern.permute.xlu0 0
    %75 = vperm.xlu0 %74, %v64
    %v76 = vpop.permute.xlu0 %75
    %77 = vset.pattern.permute.xlu0 0
    %78 = vperm.xlu0 %77, %v65
    %v79 = vpop.permute.xlu0 %78
    %vm80 = vcmp.eq.s32.totalorder %v67, %v70
    %vm81 = vcmp.eq.s32.totalorder %v67, %v73
    %vm82 = vcmp.eq.s32.totalorder %v67, %v76
    %vm83 = vcmp.eq.s32.totalorder %v67, %v79
    %v84 = vsel %vm80, 1, 0
    %v85 = vsel %vm81, 1, 0
    %v86 = vsel %vm82, 1, 0
    %v87 = vsel %vm83, 1, 0
    %v88 = vcvt.s32.f32 %v84
    %v89 = vcvt.s32.f32 %v85
    %v90 = vcvt.s32.f32 %v86
    %v91 = vcvt.s32.f32 %v87
    %v92 = vld [vmem:[%s1] sm:$0xff]
    %v93 = vld [vmem:[%s1 + $0x8] sm:$0xff]
    %v94 = vld [vmem:[%s1 + $0x10] sm:$0xff]
    %v95 = vld [vmem:[%s1 + $0x18] sm:$0xff]
    %v96 = vld [vmem:[%s1 + $0x20] sm:$0xff]
    %v97 = vld [vmem:[%s1 + $0x28] sm:$0xff]
    %v98 = vld [vmem:[%s1 + $0x30] sm:$0x7]
    %vm99 = vcmask 416768
    %v101 = vsel %vm99, %v88, 0
    %v104 = vsel %vm99, %v89, 0
    %v107 = vsel %vm99, %v90, 0
    %v110 = vsel %vm99, %v91, 0
    %vm112 = vcmask 1042432
    %v114 = vsel %vm112, %v98, 0
    %116 = vmatprep.subr.mxu0 0.0
    %117 = vmatpush1.msra.mxu0 %v92
    %118 = vmatprep.subr.mxu0 0.0
    %119 = vmatpush1.msra.mxu0 %v93
    %120 = vmatprep.subr.mxu0 0.0
    %121 = vmatpush1.msra.mxu0 %v94
    %122 = vmatprep.subr.mxu0 0.0
    %123 = vmatpush1.msra.mxu0 %v95
    %124 = vmatprep.subr.mxu0 0.0
    %125 = vmatpush1.msra.mxu0 %v96
    %126 = vmatprep.subr.mxu0 0.0
    %127 = vmatpush1.msra.mxu0 %v97
    %128 = vmatprep.subr.mxu0 0.0
    %129 = vmatpush1.msra.mxu0 %v114
    %130 = vmatprep.subr.mxu0 0.0
    %131 = vmatpush1.msra.mxu0 0.0
    %132 = vmatprep.subr.mxu0 0.0
    %133 = vmatpush1.msra.mxu0 0.0
    %134 = vmatprep.subr.mxu0 0.0
    %135 = vmatpush1.msra.mxu0 0.0
    %136 = vmatprep.subr.mxu0 0.0
    %137 = vmatpush1.msra.mxu0 0.0
    %138 = vmatprep.subr.mxu0 0.0
    %139 = vmatpush1.msra.mxu0 0.0
    %140 = vmatprep.subr.mxu0 0.0
    %141 = vmatpush1.msra.mxu0 0.0
    %142 = vmatprep.subr.mxu0 0.0
    %143 = vmatpush1.msra.mxu0 0.0
    %144 = vmatprep.subr.mxu0 0.0
    %145 = vmatpush1.msra.mxu0 0.0
    %146 = vmatprep.subr.mxu0 0.0
    %147 = vmatpush1.msra.mxu0 0.0
    %148 = vmatprep.subr.mxu0 0.0
    %149 = vmatpush1.msra.mxu0 0.0
    %150 = vmatprep.subr.mxu0 0.0
    %151 = vmatpush1.msra.mxu0 0.0
    %152 = vmatprep.subr.mxu0 0.0
    %153 = vmatpush1.msra.mxu0 0.0
    %154 = vmatprep.subr.mxu0 0.0
    %155 = vmatpush1.msra.mxu0 0.0
    %156 = vmatprep.subr.mxu0 0.0
    %157 = vmatpush1.msra.mxu0 0.0
    %158 = vmatprep.subr.mxu0 0.0
    %159 = vmatpush1.msra.mxu0 0.0
    %160 = vmatprep.subr.mxu0 0.0
    %161 = vmatpush1.msra.mxu0 0.0
    %162 = vmatprep.subr.mxu0 0.0
    %163 = vmatpush1.msra.mxu0 0.0
    %164 = vmatprep.subr.mxu0 0.0
    %165 = vmatpush1.msra.mxu0 0.0
    %166 = vmatprep.subr.mxu0 0.0
    %167 = vmatpush1.msra.mxu0 0.0
    %168 = vmatprep.subr.mxu0 0.0
    %169 = vmatpush1.msra.mxu0 0.0
    %170 = vmatprep.subr.mxu0 0.0
    %171 = vmatpush1.msra.mxu0 0.0
    %172 = vmatprep.subr.mxu0 0.0
    %173 = vmatpush1.msra.mxu0 0.0
    %174 = vmatprep.subr.mxu0 0.0
    %175 = vmatpush1.msra.mxu0 0.0
    %176 = vmatprep.subr.mxu0 0.0
    %177 = vmatpush1.msra.mxu0 0.0
    %178 = vmatprep.subr.mxu0 0.0
    %179 = vmatpush1.msra.mxu0 0.0
    %180 = vmatprep.mubr.f32.mxu0 0.0
    %181 = vmatmul.mubr.f32.gmra.mrb[0].mxu0 %v101
    %v182 = vpop.f32.mrb[0].mxu0
    %v183 = vadd.f32 0.0, %v182
    %v184 = vpop.f32.mrb[0].mxu0
    %185 = vmatprep.mubr.f32.mxu0 0.0
    %186 = vmatmul.mubr.f32.gmra.mrb[0].mxu0 %v104
    %v187 = vpop.f32.mrb[0].mxu0
    %v188 = vadd.f32 0.0, %v187
    %v189 = vpop.f32.mrb[0].mxu0
    %190 = vmatprep.mubr.f32.mxu0 0.0
    %191 = vmatmul.mubr.f32.gmra.mrb[0].mxu0 %v107
    %v192 = vpop.f32.mrb[0].mxu0
    %v193 = vadd.f32 0.0, %v192
    %v194 = vpop.f32.mrb[0].mxu0
    %195 = vmatprep.mubr.f32.mxu0 0.0
    %196 = vmatmul.mubr.f32.gmra.mrb[0].mxu0 %v110
    %v197 = vpop.f32.mrb[0].mxu0
    %v198 = vadd.f32 0.0, %v197
    %v199 = vpop.f32.mrb[0].mxu0
    %200 = vdwg.mxu0
    %v201 = vld [vmem:[#allocation2] sm:$0xff]
    %v202 = vld [vmem:[#allocation2 + $0x8] sm:$0xff]
    %vm203 = vcmask 130048
    %v205 = vsel %vm203, %v183, 0
    %v208 = vsel %vm203, %v188, 0
    %v211 = vsel %vm203, %v193, 0
    %v214 = vsel %vm203, %v198, 0
    %216 = vmatprep.subr.mxu0 0.0
    %217 = vmatpush1.msra.mxu0 %v201
    %218 = vmatprep.subr.mxu0 0.0
    %219 = vmatpush1.msra.mxu0 %v202
    %220 = vmatprep.subr.mxu0 0.0
    %221 = vmatpush1.msra.mxu0 0.0
    %222 = vmatprep.subr.mxu0 0.0
    %223 = vmatpush1.msra.mxu0 0.0
    %224 = vmatprep.subr.mxu0 0.0
    %225 = vmatpush1.msra.mxu0 0.0
    %226 = vmatprep.subr.mxu0 0.0
    %227 = vmatpush1.msra.mxu0 0.0
    %228 = vmatprep.subr.mxu0 0.0
    %229 = vmatpush1.msra.mxu0 0.0
    %230 = vmatprep.subr.mxu0 0.0
    %231 = vmatpush1.msra.mxu0 0.0
    %232 = vmatprep.subr.mxu0 0.0
    %233 = vmatpush1.msra.mxu0 0.0
    %234 = vmatprep.subr.mxu0 0.0
    %235 = vmatpush1.msra.mxu0 0.0
    %236 = vmatprep.subr.mxu0 0.0
    %237 = vmatpush1.msra.mxu0 0.0
    %238 = vmatprep.subr.mxu0 0.0
    %239 = vmatpush1.msra.mxu0 0.0
    %240 = vmatprep.subr.mxu0 0.0
    %241 = vmatpush1.msra.mxu0 0.0
    %242 = vmatprep.subr.mxu0 0.0
    %243 = vmatpush1.msra.mxu0 0.0
    %244 = vmatprep.subr.mxu0 0.0
    %245 = vmatpush1.msra.mxu0 0.0
    %246 = vmatprep.subr.mxu0 0.0
    %247 = vmatpush1.msra.mxu0 0.0
    %248 = vmatprep.subr.mxu0 0.0
    %249 = vmatpush1.msra.mxu0 0.0
    %250 = vmatprep.subr.mxu0 0.0
    %251 = vmatpush1.msra.mxu0 0.0
    %252 = vmatprep.subr.mxu0 0.0
    %253 = vmatpush1.msra.mxu0 0.0
    %254 = vmatprep.subr.mxu0 0.0
    %255 = vmatpush1.msra.mxu0 0.0
    %256 = vmatprep.subr.mxu0 0.0
    %257 = vmatpush1.msra.mxu0 0.0
    %258 = vmatprep.subr.mxu0 0.0
    %259 = vmatpush1.msra.mxu0 0.0
    %260 = vmatprep.subr.mxu0 0.0
    %261 = vmatpush1.msra.mxu0 0.0
    %262 = vmatprep.subr.mxu0 0.0
    %263 = vmatpush1.msra.mxu0 0.0
    %264 = vmatprep.subr.mxu0 0.0
    %265 = vmatpush1.msra.mxu0 0.0
    %266 = vmatprep.subr.mxu0 0.0
    %267 = vmatpush1.msra.mxu0 0.0
    %268 = vmatprep.subr.mxu0 0.0
    %269 = vmatpush1.msra.mxu0 0.0
    %270 = vmatprep.subr.mxu0 0.0
    %271 = vmatpush1.msra.mxu0 0.0
    %272 = vmatprep.subr.mxu0 0.0
    %273 = vmatpush1.msra.mxu0 0.0
    %274 = vmatprep.subr.mxu0 0.0
    %275 = vmatpush1.msra.mxu0 0.0
    %276 = vmatprep.subr.mxu0 0.0
    %277 = vmatpush1.msra.mxu0 0.0
    %278 = vmatprep.subr.mxu0 0.0
    %279 = vmatpush1.msra.mxu0 0.0
    %280 = vmatprep.mubr.f32.mxu0 0.0
    %281 = vmatmul.mubr.f32.gmra.mrb[0].mxu0 %v205
    %v282 = vpop.f32.mrb[0].mxu0
    %v283 = vadd.f32 0.0, %v282
    %v284 = vpop.f32.mrb[0].mxu0
    %285 = vmatprep.mubr.f32.mxu0 0.0
    %286 = vmatmul.mubr.f32.gmra.mrb[0].mxu0 %v208
    %v287 = vpop.f32.mrb[0].mxu0
    %v288 = vadd.f32 0.0, %v287
    %v289 = vpop.f32.mrb[0].mxu0
    %290 = vmatprep.mubr.f32.mxu0 0.0
    %291 = vmatmul.mubr.f32.gmra.mrb[0].mxu0 %v211
    %v292 = vpop.f32.mrb[0].mxu0
    %v293 = vadd.f32 0.0, %v292
    %v294 = vpop.f32.mrb[0].mxu0
    %295 = vmatprep.mubr.f32.mxu0 0.0
    %296 = vmatmul.mubr.f32.gmra.mrb[0].mxu0 %v214
    %v297 = vpop.f32.mrb[0].mxu0
    %v298 = vadd.f32 0.0, %v297
    %v299 = vpop.f32.mrb[0].mxu0
    %300 = vdwg.mxu0
    %s301 = scalar_lea.vmem [#allocation2], 16
    %v302 = vld [vmem:[%s301] sm:$0xff]
    %v303 = vld [vmem:[%s301 + $0x8] sm:$0xff]
    %304 = vmatprep.subr.mxu0 0.0
    %305 = vmatpush1.msra.mxu0 %v302
    %306 = vmatprep.subr.mxu0 0.0
    %307 = vmatpush1.msra.mxu0 %v303
    %308 = vmatprep.subr.mxu0 0.0
    %309 = vmatpush1.msra.mxu0 0.0
    %310 = vmatprep.subr.mxu0 0.0
    %311 = vmatpush1.msra.mxu0 0.0
    %312 = vmatprep.subr.mxu0 0.0
    %313 = vmatpush1.msra.mxu0 0.0
    %314 = vmatprep.subr.mxu0 0.0
    %315 = vmatpush1.msra.mxu0 0.0
    %316 = vmatprep.subr.mxu0 0.0
    %317 = vmatpush1.msra.mxu0 0.0
    %318 = vmatprep.subr.mxu0 0.0
    %319 = vmatpush1.msra.mxu0 0.0
    %320 = vmatprep.subr.mxu0 0.0
    %321 = vmatpush1.msra.mxu0 0.0
    %322 = vmatprep.subr.mxu0 0.0
    %323 = vmatpush1.msra.mxu0 0.0
    %324 = vmatprep.subr.mxu0 0.0
    %325 = vmatpush1.msra.mxu0 0.0
    %326 = vmatprep.subr.mxu0 0.0
    %327 = vmatpush1.msra.mxu0 0.0
    %328 = vmatprep.subr.mxu0 0.0
    %329 = vmatpush1.msra.mxu0 0.0
    %330 = vmatprep.subr.mxu0 0.0
    %331 = vmatpush1.msra.mxu0 0.0
    %332 = vmatprep.subr.mxu0 0.0
    %333 = vmatpush1.msra.mxu0 0.0
    %334 = vmatprep.subr.mxu0 0.0
    %335 = vmatpush1.msra.mxu0 0.0
    %336 = vmatprep.subr.mxu0 0.0
    %337 = vmatpush1.msra.mxu0 0.0
    %338 = vmatprep.subr.mxu0 0.0
    %339 = vmatpush1.msra.mxu0 0.0
    %340 = vmatprep.subr.mxu0 0.0
    %341 = vmatpush1.msra.mxu0 0.0
    %342 = vmatprep.subr.mxu0 0.0
    %343 = vmatpush1.msra.mxu0 0.0
    %344 = vmatprep.subr.mxu0 0.0
    %345 = vmatpush1.msra.mxu0 0.0
    %346 = vmatprep.subr.mxu0 0.0
    %347 = vmatpush1.msra.mxu0 0.0
    %348 = vmatprep.subr.mxu0 0.0
    %349 = vmatpush1.msra.mxu0 0.0
    %350 = vmatprep.subr.mxu0 0.0
    %351 = vmatpush1.msra.mxu0 0.0
    %352 = vmatprep.subr.mxu0 0.0
    %353 = vmatpush1.msra.mxu0 0.0
    %354 = vmatprep.subr.mxu0 0.0
    %355 = vmatpush1.msra.mxu0 0.0
    %356 = vmatprep.subr.mxu0 0.0
    %357 = vmatpush1.msra.mxu0 0.0
    %358 = vmatprep.subr.mxu0 0.0
    %359 = vmatpush1.msra.mxu0 0.0
    %360 = vmatprep.subr.mxu0 0.0
    %361 = vmatpush1.msra.mxu0 0.0
    %362 = vmatprep.subr.mxu0 0.0
    %363 = vmatpush1.msra.mxu0 0.0
    %364 = vmatprep.subr.mxu0 0.0
    %365 = vmatpush1.msra.mxu0 0.0
    %366 = vmatprep.subr.mxu0 0.0
    %367 = vmatpush1.msra.mxu0 0.0
    %368 = vmatprep.mubr.f32.mxu0 0.0
    %369 = vmatmul.mubr.f32.gmra.mrb[0].mxu0 %v205
    %v370 = vpop.f32.mrb[0].mxu0
    %v371 = vadd.f32 0.0, %v370
    %v372 = vpop.f32.mrb[0].mxu0
    %373 = vmatprep.mubr.f32.mxu0 0.0
    %374 = vmatmul.mubr.f32.gmra.mrb[0].mxu0 %v208
    %v375 = vpop.f32.mrb[0].mxu0
    %v376 = vadd.f32 0.0, %v375
    %v377 = vpop.f32.mrb[0].mxu0
    %378 = vmatprep.mubr.f32.mxu0 0.0
    %379 = vmatmul.mubr.f32.gmra.mrb[0].mxu0 %v211
    %v380 = vpop.f32.mrb[0].mxu0
    %v381 = vadd.f32 0.0, %v380
    %v382 = vpop.f32.mrb[0].mxu0
    %383 = vmatprep.mubr.f32.mxu0 0.0
    %384 = vmatmul.mubr.f32.gmra.mrb[0].mxu0 %v214
    %v385 = vpop.f32.mrb[0].mxu0
    %v386 = vadd.f32 0.0, %v385
    %v387 = vpop.f32.mrb[0].mxu0
    %388 = vdwg.mxu0
    %vm393 = vcmask 1046528
    %v394 = vrot.slane %v371, 1
    %v395 = vrot.slane %v376, 1
    %v396 = vsel %vm393, %v394, %v395
    %v397 = vrot.slane %v381, 1
    %v398 = vrot.slane %v386, 1
    %v399 = vsel %vm393, %v397, %v398
    %v404 = vadd.f32 %v283, %v396
    %v405 = vadd.f32 %v288, %v395
    %v406 = vadd.f32 %v293, %v399
    %v407 = vadd.f32 %v298, %v398
    %s408 = scalar_lea.vmem [#allocation2], 32
    %v409 = vld [vmem:[%s408] sm:$0xff]
    %v410 = vld [vmem:[%s408 + $0x8] sm:$0xff]
    %411 = vmatprep.subr.mxu0 0.0
    %412 = vmatpush1.msra.mxu0 %v409
    %413 = vmatprep.subr.mxu0 0.0
    %414 = vmatpush1.msra.mxu0 %v410
    %415 = vmatprep.subr.mxu0 0.0
    %416 = vmatpush1.msra.mxu0 0.0
    %417 = vmatprep.subr.mxu0 0.0
    %418 = vmatpush1.msra.mxu0 0.0
    %419 = vmatprep.subr.mxu0 0.0
    %420 = vmatpush1.msra.mxu0 0.0
    %421 = vmatprep.subr.mxu0 0.0
    %422 = vmatpush1.msra.mxu0 0.0
    %423 = vmatprep.subr.mxu0 0.0
    %424 = vmatpush1.msra.mxu0 0.0
    %425 = vmatprep.subr.mxu0 0.0
    %426 = vmatpush1.msra.mxu0 0.0
    %427 = vmatprep.subr.mxu0 0.0
    %428 = vmatpush1.msra.mxu0 0.0
    %429 = vmatprep.subr.mxu0 0.0
    %430 = vmatpush1.msra.mxu0 0.0
    %431 = vmatprep.subr.mxu0 0.0
    %432 = vmatpush1.msra.mxu0 0.0
    %433 = vmatprep.subr.mxu0 0.0
    %434 = vmatpush1.msra.mxu0 0.0
    %435 = vmatprep.subr.mxu0 0.0
    %436 = vmatpush1.msra.mxu0 0.0
    %437 = vmatprep.subr.mxu0 0.0
    %438 = vmatpush1.msra.mxu0 0.0
    %439 = vmatprep.subr.mxu0 0.0
    %440 = vmatpush1.msra.mxu0 0.0
    %441 = vmatprep.subr.mxu0 0.0
    %442 = vmatpush1.msra.mxu0 0.0
    %443 = vmatprep.subr.mxu0 0.0
    %444 = vmatpush1.msra.mxu0 0.0
    %445 = vmatprep.subr.mxu0 0.0
    %446 = vmatpush1.msra.mxu0 0.0
    %447 = vmatprep.subr.mxu0 0.0
    %448 = vmatpush1.msra.mxu0 0.0
    %449 = vmatprep.subr.mxu0 0.0
    %450 = vmatpush1.msra.mxu0 0.0
    %451 = vmatprep.subr.mxu0 0.0
    %452 = vmatpush1.msra.mxu0 0.0
    %453 = vmatprep.subr.mxu0 0.0
    %454 = vmatpush1.msra.mxu0 0.0
    %455 = vmatprep.subr.mxu0 0.0
    %456 = vmatpush1.msra.mxu0 0.0
    %457 = vmatprep.subr.mxu0 0.0
    %458 = vmatpush1.msra.mxu0 0.0
    %459 = vmatprep.subr.mxu0 0.0
    %460 = vmatpush1.msra.mxu0 0.0
    %461 = vmatprep.subr.mxu0 0.0
    %462 = vmatpush1.msra.mxu0 0.0
    %463 = vmatprep.subr.mxu0 0.0
    %464 = vmatpush1.msra.mxu0 0.0
    %465 = vmatprep.subr.mxu0 0.0
    %466 = vmatpush1.msra.mxu0 0.0
    %467 = vmatprep.subr.mxu0 0.0
    %468 = vmatpush1.msra.mxu0 0.0
    %469 = vmatprep.subr.mxu0 0.0
    %470 = vmatpush1.msra.mxu0 0.0
    %471 = vmatprep.subr.mxu0 0.0
    %472 = vmatpush1.msra.mxu0 0.0
    %473 = vmatprep.subr.mxu0 0.0
    %474 = vmatpush1.msra.mxu0 0.0
    %475 = vmatprep.mubr.f32.mxu0 0.0
    %476 = vmatmul.mubr.f32.gmra.mrb[0].mxu0 %v205
    %v477 = vpop.f32.mrb[0].mxu0
    %v478 = vadd.f32 0.0, %v477
    %v479 = vpop.f32.mrb[0].mxu0
    %480 = vmatprep.mubr.f32.mxu0 0.0
    %481 = vmatmul.mubr.f32.gmra.mrb[0].mxu0 %v208
    %v482 = vpop.f32.mrb[0].mxu0
    %v483 = vadd.f32 0.0, %v482
    %v484 = vpop.f32.mrb[0].mxu0
    %485 = vmatprep.mubr.f32.mxu0 0.0
    %486 = vmatmul.mubr.f32.gmra.mrb[0].mxu0 %v211
    %v487 = vpop.f32.mrb[0].mxu0
    %v488 = vadd.f32 0.0, %v487
    %v489 = vpop.f32.mrb[0].mxu0
    %490 = vmatprep.mubr.f32.mxu0 0.0
    %491 = vmatmul.mubr.f32.gmra.mrb[0].mxu0 %v214
    %v492 = vpop.f32.mrb[0].mxu0
    %v493 = vadd.f32 0.0, %v492
    %v494 = vpop.f32.mrb[0].mxu0
    %495 = vdwg.mxu0
    %vm500 = vcmask 1045504
    %v501 = vrot.slane %v478, 2
    %v502 = vrot.slane %v483, 2
    %v503 = vsel %vm500, %v501, %v502
    %v504 = vrot.slane %v488, 2
    %v505 = vrot.slane %v493, 2
    %v506 = vsel %vm500, %v504, %v505
    %v511 = vadd.f32 %v404, %v503
    %v512 = vadd.f32 %v405, %v502
    %v513 = vadd.f32 %v406, %v506
    %v514 = vadd.f32 %v407, %v505
    %v515 = vsel %vm203, %v511, -inf
    %vm516 = vcmask 128000
    %v517 = vsel %vm516, %v512, -inf
    %v518 = vmax.f32 %v515, %v517
    %v519 = vrot.slane %v518, 4
    %v520 = vmax.f32 %v518, %v519
    %v521 = vrot.slane %v520, 2
    %v522 = vmax.f32 %v520, %v521
    %v523 = vrot.slane %v522, 1
    %v524 = vmax.f32 %v522, %v523
    %v525 = vsel %vm203, %v513, -inf
    %v526 = vsel %vm516, %v514, -inf
    %v527 = vmax.f32 %v525, %v526
    %v528 = vrot.slane %v527, 4
    %v529 = vmax.f32 %v527, %v528
    %v530 = vrot.slane %v529, 2
    %v531 = vmax.f32 %v529, %v530
    %v532 = vrot.slane %v531, 1
    %v533 = vmax.f32 %v531, %v532
    %v534 = vld [vmem:[%s3] sm:$0x1]
    %v536 = vlaneseq
    %v537 = vshrl.u32 %v536, 7
    %v538 = vsub.s32 0, %v537
    %v539 = vrot.slane %v534, %v538
    %v541 = vadd.f32 %v524, %v539
    %v542 = vadd.f32 %v533, %v539
    %v543 = vmax.f32 %v541, 0.0
    %v544 = vmax.f32 %v542, 0.0
    %v545 = vld [vmem:[%s4] sm:$0xff]
    %v546 = vld [vmem:[%s4 + $0x8] sm:$0xff]
    %547 = vmatprep.subr.mxu0 0.0
    %548 = vmatpush1.msra.mxu0 %v545
    %549 = vmatprep.subr.mxu0 0.0
    %550 = vmatpush1.msra.mxu0 %v546
    %551 = vmatprep.subr.mxu0 0.0
    %552 = vmatpush1.msra.mxu0 0.0
    %553 = vmatprep.subr.mxu0 0.0
    %554 = vmatpush1.msra.mxu0 0.0
    %555 = vmatprep.subr.mxu0 0.0
    %556 = vmatpush1.msra.mxu0 0.0
    %557 = vmatprep.subr.mxu0 0.0
    %558 = vmatpush1.msra.mxu0 0.0
    %559 = vmatprep.subr.mxu0 0.0
    %560 = vmatpush1.msra.mxu0 0.0
    %561 = vmatprep.subr.mxu0 0.0
    %562 = vmatpush1.msra.mxu0 0.0
    %563 = vmatprep.subr.mxu0 0.0
    %564 = vmatpush1.msra.mxu0 0.0
    %565 = vmatprep.subr.mxu0 0.0
    %566 = vmatpush1.msra.mxu0 0.0
    %567 = vmatprep.subr.mxu0 0.0
    %568 = vmatpush1.msra.mxu0 0.0
    %569 = vmatprep.subr.mxu0 0.0
    %570 = vmatpush1.msra.mxu0 0.0
    %571 = vmatprep.subr.mxu0 0.0
    %572 = vmatpush1.msra.mxu0 0.0
    %573 = vmatprep.subr.mxu0 0.0
    %574 = vmatpush1.msra.mxu0 0.0
    %575 = vmatprep.subr.mxu0 0.0
    %576 = vmatpush1.msra.mxu0 0.0
    %577 = vmatprep.subr.mxu0 0.0
    %578 = vmatpush1.msra.mxu0 0.0
    %579 = vmatprep.subr.mxu0 0.0
    %580 = vmatpush1.msra.mxu0 0.0
    %581 = vmatprep.subr.mxu0 0.0
    %582 = vmatpush1.msra.mxu0 0.0
    %583 = vmatprep.subr.mxu0 0.0
    %584 = vmatpush1.msra.mxu0 0.0
    %585 = vmatprep.subr.mxu0 0.0
    %586 = vmatpush1.msra.mxu0 0.0
    %587 = vmatprep.subr.mxu0 0.0
    %588 = vmatpush1.msra.mxu0 0.0
    %589 = vmatprep.subr.mxu0 0.0
    %590 = vmatpush1.msra.mxu0 0.0
    %591 = vmatprep.subr.mxu0 0.0
    %592 = vmatpush1.msra.mxu0 0.0
    %593 = vmatprep.subr.mxu0 0.0
    %594 = vmatpush1.msra.mxu0 0.0
    %595 = vmatprep.subr.mxu0 0.0
    %596 = vmatpush1.msra.mxu0 0.0
    %597 = vmatprep.subr.mxu0 0.0
    %598 = vmatpush1.msra.mxu0 0.0
    %599 = vmatprep.subr.mxu0 0.0
    %600 = vmatpush1.msra.mxu0 0.0
    %601 = vmatprep.subr.mxu0 0.0
    %602 = vmatpush1.msra.mxu0 0.0
    %603 = vmatprep.subr.mxu0 0.0
    %604 = vmatpush1.msra.mxu0 0.0
    %605 = vmatprep.subr.mxu0 0.0
    %606 = vmatpush1.msra.mxu0 0.0
    %607 = vmatprep.subr.mxu0 0.0
    %608 = vmatpush1.msra.mxu0 0.0
    %609 = vmatprep.subr.mxu0 0.0
    %610 = vmatpush1.msra.mxu0 0.0
    %611 = vmatprep.mubr.f32.mxu0 0.0
    %612 = vmatmul.mubr.f32.gmra.mrb[0].mxu0 %v205
    %v613 = vpop.f32.mrb[0].mxu0
    %v614 = vadd.f32 0.0, %v613
    %v615 = vpop.f32.mrb[0].mxu0
    %616 = vmatprep.mubr.f32.mxu0 0.0
    %617 = vmatmul.mubr.f32.gmra.mrb[0].mxu0 %v208
    %v618 = vpop.f32.mrb[0].mxu0
    %v619 = vadd.f32 0.0, %v618
    %v620 = vpop.f32.mrb[0].mxu0
    %621 = vmatprep.mubr.f32.mxu0 0.0
    %622 = vmatmul.mubr.f32.gmra.mrb[0].mxu0 %v211
    %v623 = vpop.f32.mrb[0].mxu0
    %v624 = vadd.f32 0.0, %v623
    %v625 = vpop.f32.mrb[0].mxu0
    %626 = vmatprep.mubr.f32.mxu0 0.0
    %627 = vmatmul.mubr.f32.gmra.mrb[0].mxu0 %v214
    %v628 = vpop.f32.mrb[0].mxu0
    %v629 = vadd.f32 0.0, %v628
    %v630 = vpop.f32.mrb[0].mxu0
    %631 = vdwg.mxu0
    %s632 = scalar_lea.vmem %s4, 16
    %v633 = vld [vmem:[%s632] sm:$0xff]
    %v634 = vld [vmem:[%s632 + $0x8] sm:$0xff]
    %635 = vmatprep.subr.mxu0 0.0
    %636 = vmatpush1.msra.mxu0 %v633
    %637 = vmatprep.subr.mxu0 0.0
    %638 = vmatpush1.msra.mxu0 %v634
    %639 = vmatprep.subr.mxu0 0.0
    %640 = vmatpush1.msra.mxu0 0.0
    %641 = vmatprep.subr.mxu0 0.0
    %642 = vmatpush1.msra.mxu0 0.0
    %643 = vmatprep.subr.mxu0 0.0
    %644 = vmatpush1.msra.mxu0 0.0
    %645 = vmatprep.subr.mxu0 0.0
    %646 = vmatpush1.msra.mxu0 0.0
    %647 = vmatprep.subr.mxu0 0.0
    %648 = vmatpush1.msra.mxu0 0.0
    %649 = vmatprep.subr.mxu0 0.0
    %650 = vmatpush1.msra.mxu0 0.0
    %651 = vmatprep.subr.mxu0 0.0
    %652 = vmatpush1.msra.mxu0 0.0
    %653 = vmatprep.subr.mxu0 0.0
    %654 = vmatpush1.msra.mxu0 0.0
    %655 = vmatprep.subr.mxu0 0.0
    %656 = vmatpush1.msra.mxu0 0.0
    %657 = vmatprep.subr.mxu0 0.0
    %658 = vmatpush1.msra.mxu0 0.0
    %659 = vmatprep.subr.mxu0 0.0
    %660 = vmatpush1.msra.mxu0 0.0
    %661 = vmatprep.subr.mxu0 0.0
    %662 = vmatpush1.msra.mxu0 0.0
    %663 = vmatprep.subr.mxu0 0.0
    %664 = vmatpush1.msra.mxu0 0.0
    %665 = vmatprep.subr.mxu0 0.0
    %666 = vmatpush1.msra.mxu0 0.0
    %667 = vmatprep.subr.mxu0 0.0
    %668 = vmatpush1.msra.mxu0 0.0
    %669 = vmatprep.subr.mxu0 0.0
    %670 = vmatpush1.msra.mxu0 0.0
    %671 = vmatprep.subr.mxu0 0.0
    %672 = vmatpush1.msra.mxu0 0.0
    %673 = vmatprep.subr.mxu0 0.0
    %674 = vmatpush1.msra.mxu0 0.0
    %675 = vmatprep.subr.mxu0 0.0
    %676 = vmatpush1.msra.mxu0 0.0
    %677 = vmatprep.subr.mxu0 0.0
    %678 = vmatpush1.msra.mxu0 0.0
    %679 = vmatprep.subr.mxu0 0.0
    %680 = vmatpush1.msra.mxu0 0.0
    %681 = vmatprep.subr.mxu0 0.0
    %682 = vmatpush1.msra.mxu0 0.0
    %683 = vmatprep.subr.mxu0 0.0
    %684 = vmatpush1.msra.mxu0 0.0
    %685 = vmatprep.subr.mxu0 0.0
    %686 = vmatpush1.msra.mxu0 0.0
    %687 = vmatprep.subr.mxu0 0.0
    %688 = vmatpush1.msra.mxu0 0.0
    %689 = vmatprep.subr.mxu0 0.0
    %690 = vmatpush1.msra.mxu0 0.0
    %691 = vmatprep.subr.mxu0 0.0
    %692 = vmatpush1.msra.mxu0 0.0
    %693 = vmatprep.subr.mxu0 0.0
    %694 = vmatpush1.msra.mxu0 0.0
    %695 = vmatprep.subr.mxu0 0.0
    %696 = vmatpush1.msra.mxu0 0.0
    %697 = vmatprep.subr.mxu0 0.0
    %698 = vmatpush1.msra.mxu0 0.0
    %699 = vmatprep.mubr.f32.mxu0 0.0
    %700 = vmatmul.mubr.f32.gmra.mrb[0].mxu0 %v205
    %v701 = vpop.f32.mrb[0].mxu0
    %v702 = vadd.f32 0.0, %v701
    %v703 = vpop.f32.mrb[0].mxu0
    %704 = vmatprep.mubr.f32.mxu0 0.0
    %705 = vmatmul.mubr.f32.gmra.mrb[0].mxu0 %v208
    %v706 = vpop.f32.mrb[0].mxu0
    %v707 = vadd.f32 0.0, %v706
    %v708 = vpop.f32.mrb[0].mxu0
    %709 = vmatprep.mubr.f32.mxu0 0.0
    %710 = vmatmul.mubr.f32.gmra.mrb[0].mxu0 %v211
    %v711 = vpop.f32.mrb[0].mxu0
    %v712 = vadd.f32 0.0, %v711
    %v713 = vpop.f32.mrb[0].mxu0
    %714 = vmatprep.mubr.f32.mxu0 0.0
    %715 = vmatmul.mubr.f32.gmra.mrb[0].mxu0 %v214
    %v716 = vpop.f32.mrb[0].mxu0
    %v717 = vadd.f32 0.0, %v716
    %v718 = vpop.f32.mrb[0].mxu0
    %719 = vdwg.mxu0
    %v724 = vrot.slane %v702, 1
    %v725 = vrot.slane %v707, 1
    %v726 = vsel %vm393, %v724, %v725
    %v727 = vrot.slane %v712, 1
    %v728 = vrot.slane %v717, 1
    %v729 = vsel %vm393, %v727, %v728
    %v734 = vadd.f32 %v614, %v726
    %v735 = vadd.f32 %v619, %v725
    %v736 = vadd.f32 %v624, %v729
    %v737 = vadd.f32 %v629, %v728
    %s738 = scalar_lea.vmem %s4, 32
    %v739 = vld [vmem:[%s738] sm:$0xff]
    %v740 = vld [vmem:[%s738 + $0x8] sm:$0xff]
    %741 = vmatprep.subr.mxu0 0.0
    %742 = vmatpush1.msra.mxu0 %v739
    %743 = vmatprep.subr.mxu0 0.0
    %744 = vmatpush1.msra.mxu0 %v740
    %745 = vmatprep.subr.mxu0 0.0
    %746 = vmatpush1.msra.mxu0 0.0
    %747 = vmatprep.subr.mxu0 0.0
    %748 = vmatpush1.msra.mxu0 0.0
    %749 = vmatprep.subr.mxu0 0.0
    %750 = vmatpush1.msra.mxu0 0.0
    %751 = vmatprep.subr.mxu0 0.0
    %752 = vmatpush1.msra.mxu0 0.0
    %753 = vmatprep.subr.mxu0 0.0
    %754 = vmatpush1.msra.mxu0 0.0
    %755 = vmatprep.subr.mxu0 0.0
    %756 = vmatpush1.msra.mxu0 0.0
    %757 = vmatprep.subr.mxu0 0.0
    %758 = vmatpush1.msra.mxu0 0.0
    %759 = vmatprep.subr.mxu0 0.0
    %760 = vmatpush1.msra.mxu0 0.0
    %761 = vmatprep.subr.mxu0 0.0
    %762 = vmatpush1.msra.mxu0 0.0
    %763 = vmatprep.subr.mxu0 0.0
    %764 = vmatpush1.msra.mxu0 0.0
    %765 = vmatprep.subr.mxu0 0.0
    %766 = vmatpush1.msra.mxu0 0.0
    %767 = vmatprep.subr.mxu0 0.0
    %768 = vmatpush1.msra.mxu0 0.0
    %769 = vmatprep.subr.mxu0 0.0
    %770 = vmatpush1.msra.mxu0 0.0
    %771 = vmatprep.subr.mxu0 0.0
    %772 = vmatpush1.msra.mxu0 0.0
    %773 = vmatprep.subr.mxu0 0.0
    %774 = vmatpush1.msra.mxu0 0.0
    %775 = vmatprep.subr.mxu0 0.0
    %776 = vmatpush1.msra.mxu0 0.0
    %777 = vmatprep.subr.mxu0 0.0
    %778 = vmatpush1.msra.mxu0 0.0
    %779 = vmatprep.subr.mxu0 0.0
    %780 = vmatpush1.msra.mxu0 0.0
    %781 = vmatprep.subr.mxu0 0.0
    %782 = vmatpush1.msra.mxu0 0.0
    %783 = vmatprep.subr.mxu0 0.0
    %784 = vmatpush1.msra.mxu0 0.0
    %785 = vmatprep.subr.mxu0 0.0
    %786 = vmatpush1.msra.mxu0 0.0
    %787 = vmatprep.subr.mxu0 0.0
    %788 = vmatpush1.msra.mxu0 0.0
    %789 = vmatprep.subr.mxu0 0.0
    %790 = vmatpush1.msra.mxu0 0.0
    %791 = vmatprep.subr.mxu0 0.0
    %792 = vmatpush1.msra.mxu0 0.0
    %793 = vmatprep.subr.mxu0 0.0
    %794 = vmatpush1.msra.mxu0 0.0
    %795 = vmatprep.subr.mxu0 0.0
    %796 = vmatpush1.msra.mxu0 0.0
    %797 = vmatprep.subr.mxu0 0.0
    %798 = vmatpush1.msra.mxu0 0.0
    %799 = vmatprep.subr.mxu0 0.0
    %800 = vmatpush1.msra.mxu0 0.0
    %801 = vmatprep.subr.mxu0 0.0
    %802 = vmatpush1.msra.mxu0 0.0
    %803 = vmatprep.subr.mxu0 0.0
    %804 = vmatpush1.msra.mxu0 0.0
    %805 = vmatprep.mubr.f32.mxu0 0.0
    %806 = vmatmul.mubr.f32.gmra.mrb[0].mxu0 %v205
    %v807 = vpop.f32.mrb[0].mxu0
    %v808 = vadd.f32 0.0, %v807
    %v809 = vpop.f32.mrb[0].mxu0
    %810 = vmatprep.mubr.f32.mxu0 0.0
    %811 = vmatmul.mubr.f32.gmra.mrb[0].mxu0 %v208
    %v812 = vpop.f32.mrb[0].mxu0
    %v813 = vadd.f32 0.0, %v812
    %v814 = vpop.f32.mrb[0].mxu0
    %815 = vmatprep.mubr.f32.mxu0 0.0
    %816 = vmatmul.mubr.f32.gmra.mrb[0].mxu0 %v211
    %v817 = vpop.f32.mrb[0].mxu0
    %v818 = vadd.f32 0.0, %v817
    %v819 = vpop.f32.mrb[0].mxu0
    %820 = vmatprep.mubr.f32.mxu0 0.0
    %821 = vmatmul.mubr.f32.gmra.mrb[0].mxu0 %v214
    %v822 = vpop.f32.mrb[0].mxu0
    %v823 = vadd.f32 0.0, %v822
    %v824 = vpop.f32.mrb[0].mxu0
    %825 = vdwg.mxu0
    %v830 = vrot.slane %v808, 2
    %v831 = vrot.slane %v813, 2
    %v832 = vsel %vm500, %v830, %v831
    %v833 = vrot.slane %v818, 2
    %v834 = vrot.slane %v823, 2
    %v835 = vsel %vm500, %v833, %v834
    %v840 = vadd.f32 %v734, %v832
    %v841 = vadd.f32 %v735, %v831
    %v842 = vadd.f32 %v736, %v835
    %v843 = vadd.f32 %v737, %v834
    %s844 = scalar_lea.vmem %s4, 48
    %v845 = vld [vmem:[%s844] sm:$0xff]
    %v846 = vld [vmem:[%s844 + $0x8] sm:$0xff]
    %847 = vmatprep.subr.mxu0 0.0
    %848 = vmatpush1.msra.mxu0 %v845
    %849 = vmatprep.subr.mxu0 0.0
    %850 = vmatpush1.msra.mxu0 %v846
    %851 = vmatprep.subr.mxu0 0.0
    %852 = vmatpush1.msra.mxu0 0.0
    %853 = vmatprep.subr.mxu0 0.0
    %854 = vmatpush1.msra.mxu0 0.0
    %855 = vmatprep.subr.mxu0 0.0
    %856 = vmatpush1.msra.mxu0 0.0
    %857 = vmatprep.subr.mxu0 0.0
    %858 = vmatpush1.msra.mxu0 0.0
    %859 = vmatprep.subr.mxu0 0.0
    %860 = vmatpush1.msra.mxu0 0.0
    %861 = vmatprep.subr.mxu0 0.0
    %862 = vmatpush1.msra.mxu0 0.0
    %863 = vmatprep.subr.mxu0 0.0
    %864 = vmatpush1.msra.mxu0 0.0
    %865 = vmatprep.subr.mxu0 0.0
    %866 = vmatpush1.msra.mxu0 0.0
    %867 = vmatprep.subr.mxu0 0.0
    %868 = vmatpush1.msra.mxu0 0.0
    %869 = vmatprep.subr.mxu0 0.0
    %870 = vmatpush1.msra.mxu0 0.0
    %871 = vmatprep.subr.mxu0 0.0
    %872 = vmatpush1.msra.mxu0 0.0
    %873 = vmatprep.subr.mxu0 0.0
    %874 = vmatpush1.msra.mxu0 0.0
    %875 = vmatprep.subr.mxu0 0.0
    %876 = vmatpush1.msra.mxu0 0.0
    %877 = vmatprep.subr.mxu0 0.0
    %878 = vmatpush1.msra.mxu0 0.0
    %879 = vmatprep.subr.mxu0 0.0
    %880 = vmatpush1.msra.mxu0 0.0
    %881 = vmatprep.subr.mxu0 0.0
    %882 = vmatpush1.msra.mxu0 0.0
    %883 = vmatprep.subr.mxu0 0.0
    %884 = vmatpush1.msra.mxu0 0.0
    %885 = vmatprep.subr.mxu0 0.0
    %886 = vmatpush1.msra.mxu0 0.0
    %887 = vmatprep.subr.mxu0 0.0
    %888 = vmatpush1.msra.mxu0 0.0
    %889 = vmatprep.subr.mxu0 0.0
    %890 = vmatpush1.msra.mxu0 0.0
    %891 = vmatprep.subr.mxu0 0.0
    %892 = vmatpush1.msra.mxu0 0.0
    %893 = vmatprep.subr.mxu0 0.0
    %894 = vmatpush1.msra.mxu0 0.0
    %895 = vmatprep.subr.mxu0 0.0
    %896 = vmatpush1.msra.mxu0 0.0
    %897 = vmatprep.subr.mxu0 0.0
    %898 = vmatpush1.msra.mxu0 0.0
    %899 = vmatprep.subr.mxu0 0.0
    %900 = vmatpush1.msra.mxu0 0.0
    %901 = vmatprep.subr.mxu0 0.0
    %902 = vmatpush1.msra.mxu0 0.0
    %903 = vmatprep.subr.mxu0 0.0
    %904 = vmatpush1.msra.mxu0 0.0
    %905 = vmatprep.subr.mxu0 0.0
    %906 = vmatpush1.msra.mxu0 0.0
    %907 = vmatprep.subr.mxu0 0.0
    %908 = vmatpush1.msra.mxu0 0.0
    %909 = vmatprep.subr.mxu0 0.0
    %910 = vmatpush1.msra.mxu0 0.0
    %911 = vmatprep.mubr.f32.mxu0 0.0
    %912 = vmatmul.mubr.f32.gmra.mrb[0].mxu0 %v205
    %v913 = vpop.f32.mrb[0].mxu0
    %v914 = vadd.f32 0.0, %v913
    %v915 = vpop.f32.mrb[0].mxu0
    %916 = vmatprep.mubr.f32.mxu0 0.0
    %917 = vmatmul.mubr.f32.gmra.mrb[0].mxu0 %v208
    %v918 = vpop.f32.mrb[0].mxu0
    %v919 = vadd.f32 0.0, %v918
    %v920 = vpop.f32.mrb[0].mxu0
    %921 = vmatprep.mubr.f32.mxu0 0.0
    %922 = vmatmul.mubr.f32.gmra.mrb[0].mxu0 %v211
    %v923 = vpop.f32.mrb[0].mxu0
    %v924 = vadd.f32 0.0, %v923
    %v925 = vpop.f32.mrb[0].mxu0
    %926 = vmatprep.mubr.f32.mxu0 0.0
    %927 = vmatmul.mubr.f32.gmra.mrb[0].mxu0 %v214
    %v928 = vpop.f32.mrb[0].mxu0
    %v929 = vadd.f32 0.0, %v928
    %v930 = vpop.f32.mrb[0].mxu0
    %931 = vdwg.mxu0
    %vm936 = vcmask 1044480
    %v937 = vrot.slane %v914, 3
    %v938 = vrot.slane %v919, 3
    %v939 = vsel %vm936, %v937, %v938
    %v940 = vrot.slane %v924, 3
    %v941 = vrot.slane %v929, 3
    %v942 = vsel %vm936, %v940, %v941
    %v947 = vadd.f32 %v840, %v939
    %v948 = vadd.f32 %v841, %v938
    %v949 = vadd.f32 %v842, %v942
    %v950 = vadd.f32 %v843, %v941
    %v951 = vsel %vm203, %v947, -inf
    %vm952 = vcmask 126976
    %v953 = vsel %vm952, %v948, -inf
    %v954 = vmax.f32 %v951, %v953
    %v955 = vrot.slane %v954, 4
    %v956 = vmax.f32 %v954, %v955
    %v957 = vrot.slane %v956, 2
    %v958 = vmax.f32 %v956, %v957
    %v959 = vrot.slane %v958, 1
    %v960 = vmax.f32 %v958, %v959
    %v961 = vsel %vm203, %v949, -inf
    %v962 = vsel %vm952, %v950, -inf
    %v963 = vmax.f32 %v961, %v962
    %v964 = vrot.slane %v963, 4
    %v965 = vmax.f32 %v963, %v964
    %v966 = vrot.slane %v965, 2
    %v967 = vmax.f32 %v965, %v966
    %v968 = vrot.slane %v967, 1
    %v969 = vmax.f32 %v967, %v968
    %v970 = vld [vmem:[#allocation5] sm:$0x1]
    %v972 = vlaneseq
    %v973 = vshrl.u32 %v972, 7
    %v974 = vsub.s32 0, %v973
    %v975 = vrot.slane %v970, %v974
    %v977 = vadd.f32 %v960, %v975
    %v978 = vadd.f32 %v969, %v975
    %v979 = vmax.f32 %v977, 0.0
    %v980 = vmax.f32 %v978, 0.0
    %v981 = vld [vmem:[%s6] sm:$0xff]
    %v982 = vld [vmem:[%s6 + $0x8] sm:$0xff]
    %983 = vmatprep.subr.mxu0 0.0
    %984 = vmatpush1.msra.mxu0 %v981
    %985 = vmatprep.subr.mxu0 0.0
    %986 = vmatpush1.msra.mxu0 %v982
    %987 = vmatprep.subr.mxu0 0.0
    %988 = vmatpush1.msra.mxu0 0.0
    %989 = vmatprep.subr.mxu0 0.0
    %990 = vmatpush1.msra.mxu0 0.0
    %991 = vmatprep.subr.mxu0 0.0
    %992 = vmatpush1.msra.mxu0 0.0
    %993 = vmatprep.subr.mxu0 0.0
    %994 = vmatpush1.msra.mxu0 0.0
    %995 = vmatprep.subr.mxu0 0.0
    %996 = vmatpush1.msra.mxu0 0.0
    %997 = vmatprep.subr.mxu0 0.0
    %998 = vmatpush1.msra.mxu0 0.0
    %999 = vmatprep.subr.mxu0 0.0
    %1000 = vmatpush1.msra.mxu0 0.0
    %1001 = vmatprep.subr.mxu0 0.0
    %1002 = vmatpush1.msra.mxu0 0.0
    %1003 = vmatprep.subr.mxu0 0.0
    %1004 = vmatpush1.msra.mxu0 0.0
    %1005 = vmatprep.subr.mxu0 0.0
    %1006 = vmatpush1.msra.mxu0 0.0
    %1007 = vmatprep.subr.mxu0 0.0
    %1008 = vmatpush1.msra.mxu0 0.0
    %1009 = vmatprep.subr.mxu0 0.0
    %1010 = vmatpush1.msra.mxu0 0.0
    %1011 = vmatprep.subr.mxu0 0.0
    %1012 = vmatpush1.msra.mxu0 0.0
    %1013 = vmatprep.subr.mxu0 0.0
    %1014 = vmatpush1.msra.mxu0 0.0
    %1015 = vmatprep.subr.mxu0 0.0
    %1016 = vmatpush1.msra.mxu0 0.0
    %1017 = vmatprep.subr.mxu0 0.0
    %1018 = vmatpush1.msra.mxu0 0.0
    %1019 = vmatprep.subr.mxu0 0.0
    %1020 = vmatpush1.msra.mxu0 0.0
    %1021 = vmatprep.subr.mxu0 0.0
    %1022 = vmatpush1.msra.mxu0 0.0
    %1023 = vmatprep.subr.mxu0 0.0
    %1024 = vmatpush1.msra.mxu0 0.0
    %1025 = vmatprep.subr.mxu0 0.0
    %1026 = vmatpush1.msra.mxu0 0.0
    %1027 = vmatprep.subr.mxu0 0.0
    %1028 = vmatpush1.msra.mxu0 0.0
    %1029 = vmatprep.subr.mxu0 0.0
    %1030 = vmatpush1.msra.mxu0 0.0
    %1031 = vmatprep.subr.mxu0 0.0
    %1032 = vmatpush1.msra.mxu0 0.0
    %1033 = vmatprep.subr.mxu0 0.0
    %1034 = vmatpush1.msra.mxu0 0.0
    %1035 = vmatprep.subr.mxu0 0.0
    %1036 = vmatpush1.msra.mxu0 0.0
    %1037 = vmatprep.subr.mxu0 0.0
    %1038 = vmatpush1.msra.mxu0 0.0
    %1039 = vmatprep.subr.mxu0 0.0
    %1040 = vmatpush1.msra.mxu0 0.0
    %1041 = vmatprep.subr.mxu0 0.0
    %1042 = vmatpush1.msra.mxu0 0.0
    %1043 = vmatprep.subr.mxu0 0.0
    %1044 = vmatpush1.msra.mxu0 0.0
    %1045 = vmatprep.subr.mxu0 0.0
    %1046 = vmatpush1.msra.mxu0 0.0
    %1047 = vmatprep.mubr.f32.mxu0 0.0
    %1048 = vmatmul.mubr.f32.gmra.mrb[0].mxu0 %v205
    %v1049 = vpop.f32.mrb[0].mxu0
    %v1050 = vadd.f32 0.0, %v1049
    %v1051 = vpop.f32.mrb[0].mxu0
    %1052 = vmatprep.mubr.f32.mxu0 0.0
    %1053 = vmatmul.mubr.f32.gmra.mrb[0].mxu0 %v208
    %v1054 = vpop.f32.mrb[0].mxu0
    %v1055 = vadd.f32 0.0, %v1054
    %v1056 = vpop.f32.mrb[0].mxu0
    %1057 = vmatprep.mubr.f32.mxu0 0.0
    %1058 = vmatmul.mubr.f32.gmra.mrb[0].mxu0 %v211
    %v1059 = vpop.f32.mrb[0].mxu0
    %v1060 = vadd.f32 0.0, %v1059
    %v1061 = vpop.f32.mrb[0].mxu0
    %1062 = vmatprep.mubr.f32.mxu0 0.0
    %1063 = vmatmul.mubr.f32.gmra.mrb[0].mxu0 %v214
    %v1064 = vpop.f32.mrb[0].mxu0
    %v1065 = vadd.f32 0.0, %v1064
    %v1066 = vpop.f32.mrb[0].mxu0
    %1067 = vdwg.mxu0
    %s1068 = scalar_lea.vmem %s6, 16
    %v1069 = vld [vmem:[%s1068] sm:$0xff]
    %v1070 = vld [vmem:[%s1068 + $0x8] sm:$0xff]
    %1071 = vmatprep.subr.mxu0 0.0
    %1072 = vmatpush1.msra.mxu0 %v1069
    %1073 = vmatprep.subr.mxu0 0.0
    %1074 = vmatpush1.msra.mxu0 %v1070
    %1075 = vmatprep.subr.mxu0 0.0
    %1076 = vmatpush1.msra.mxu0 0.0
    %1077 = vmatprep.subr.mxu0 0.0
    %1078 = vmatpush1.msra.mxu0 0.0
    %1079 = vmatprep.subr.mxu0 0.0
    %1080 = vmatpush1.msra.mxu0 0.0
    %1081 = vmatprep.subr.mxu0 0.0
    %1082 = vmatpush1.msra.mxu0 0.0
    %1083 = vmatprep.subr.mxu0 0.0
    %1084 = vmatpush1.msra.mxu0 0.0
    %1085 = vmatprep.subr.mxu0 0.0
    %1086 = vmatpush1.msra.mxu0 0.0
    %1087 = vmatprep.subr.mxu0 0.0
    %1088 = vmatpush1.msra.mxu0 0.0
    %1089 = vmatprep.subr.mxu0 0.0
    %1090 = vmatpush1.msra.mxu0 0.0
    %1091 = vmatprep.subr.mxu0 0.0
    %1092 = vmatpush1.msra.mxu0 0.0
    %1093 = vmatprep.subr.mxu0 0.0
    %1094 = vmatpush1.msra.mxu0 0.0
    %1095 = vmatprep.subr.mxu0 0.0
    %1096 = vmatpush1.msra.mxu0 0.0
    %1097 = vmatprep.subr.mxu0 0.0
    %1098 = vmatpush1.msra.mxu0 0.0
    %1099 = vmatprep.subr.mxu0 0.0
    %1100 = vmatpush1.msra.mxu0 0.0
    %1101 = vmatprep.subr.mxu0 0.0
    %1102 = vmatpush1.msra.mxu0 0.0
    %1103 = vmatprep.subr.mxu0 0.0
    %1104 = vmatpush1.msra.mxu0 0.0
    %1105 = vmatprep.subr.mxu0 0.0
    %1106 = vmatpush1.msra.mxu0 0.0
    %1107 = vmatprep.subr.mxu0 0.0
    %1108 = vmatpush1.msra.mxu0 0.0
    %1109 = vmatprep.subr.mxu0 0.0
    %1110 = vmatpush1.msra.mxu0 0.0
    %1111 = vmatprep.subr.mxu0 0.0
    %1112 = vmatpush1.msra.mxu0 0.0
    %1113 = vmatprep.subr.mxu0 0.0
    %1114 = vmatpush1.msra.mxu0 0.0
    %1115 = vmatprep.subr.mxu0 0.0
    %1116 = vmatpush1.msra.mxu0 0.0
    %1117 = vmatprep.subr.mxu0 0.0
    %1118 = vmatpush1.msra.mxu0 0.0
    %1119 = vmatprep.subr.mxu0 0.0
    %1120 = vmatpush1.msra.mxu0 0.0
    %1121 = vmatprep.subr.mxu0 0.0
    %1122 = vmatpush1.msra.mxu0 0.0
    %1123 = vmatprep.subr.mxu0 0.0
    %1124 = vmatpush1.msra.mxu0 0.0
    %1125 = vmatprep.subr.mxu0 0.0
    %1126 = vmatpush1.msra.mxu0 0.0
    %1127 = vmatprep.subr.mxu0 0.0
    %1128 = vmatpush1.msra.mxu0 0.0
    %1129 = vmatprep.subr.mxu0 0.0
    %1130 = vmatpush1.msra.mxu0 0.0
    %1131 = vmatprep.subr.mxu0 0.0
    %1132 = vmatpush1.msra.mxu0 0.0
    %1133 = vmatprep.subr.mxu0 0.0
    %1134 = vmatpush1.msra.mxu0 0.0
    %1135 = vmatprep.mubr.f32.mxu0 0.0
    %1136 = vmatmul.mubr.f32.gmra.mrb[0].mxu0 %v205
    %v1137 = vpop.f32.mrb[0].mxu0
    %v1138 = vadd.f32 0.0, %v1137
    %v1139 = vpop.f32.mrb[0].mxu0
    %1140 = vmatprep.mubr.f32.mxu0 0.0
    %1141 = vmatmul.mubr.f32.gmra.mrb[0].mxu0 %v208
    %v1142 = vpop.f32.mrb[0].mxu0
    %v1143 = vadd.f32 0.0, %v1142
    %v1144 = vpop.f32.mrb[0].mxu0
    %1145 = vmatprep.mubr.f32.mxu0 0.0
    %1146 = vmatmul.mubr.f32.gmra.mrb[0].mxu0 %v211
    %v1147 = vpop.f32.mrb[0].mxu0
    %v1148 = vadd.f32 0.0, %v1147
    %v1149 = vpop.f32.mrb[0].mxu0
    %1150 = vmatprep.mubr.f32.mxu0 0.0
    %1151 = vmatmul.mubr.f32.gmra.mrb[0].mxu0 %v214
    %v1152 = vpop.f32.mrb[0].mxu0
    %v1153 = vadd.f32 0.0, %v1152
    %v1154 = vpop.f32.mrb[0].mxu0
    %1155 = vdwg.mxu0
    %v1160 = vrot.slane %v1138, 1
    %v1161 = vrot.slane %v1143, 1
    %v1162 = vsel %vm393, %v1160, %v1161
    %v1163 = vrot.slane %v1148, 1
    %v1164 = vrot.slane %v1153, 1
    %v1165 = vsel %vm393, %v1163, %v1164
    %v1170 = vadd.f32 %v1050, %v1162
    %v1171 = vadd.f32 %v1055, %v1161
    %v1172 = vadd.f32 %v1060, %v1165
    %v1173 = vadd.f32 %v1065, %v1164
    %s1174 = scalar_lea.vmem %s6, 32
    %v1175 = vld [vmem:[%s1174] sm:$0xff]
    %v1176 = vld [vmem:[%s1174 + $0x8] sm:$0xff]
    %1177 = vmatprep.subr.mxu0 0.0
    %1178 = vmatpush1.msra.mxu0 %v1175
    %1179 = vmatprep.subr.mxu0 0.0
    %1180 = vmatpush1.msra.mxu0 %v1176
    %1181 = vmatprep.subr.mxu0 0.0
    %1182 = vmatpush1.msra.mxu0 0.0
    %1183 = vmatprep.subr.mxu0 0.0
    %1184 = vmatpush1.msra.mxu0 0.0
    %1185 = vmatprep.subr.mxu0 0.0
    %1186 = vmatpush1.msra.mxu0 0.0
    %1187 = vmatprep.subr.mxu0 0.0
    %1188 = vmatpush1.msra.mxu0 0.0
    %1189 = vmatprep.subr.mxu0 0.0
    %1190 = vmatpush1.msra.mxu0 0.0
    %1191 = vmatprep.subr.mxu0 0.0
    %1192 = vmatpush1.msra.mxu0 0.0
    %1193 = vmatprep.subr.mxu0 0.0
    %1194 = vmatpush1.msra.mxu0 0.0
    %1195 = vmatprep.subr.mxu0 0.0
    %1196 = vmatpush1.msra.mxu0 0.0
    %1197 = vmatprep.subr.mxu0 0.0
    %1198 = vmatpush1.msra.mxu0 0.0
    %1199 = vmatprep.subr.mxu0 0.0
    %1200 = vmatpush1.msra.mxu0 0.0
    %1201 = vmatprep.subr.mxu0 0.0
    %1202 = vmatpush1.msra.mxu0 0.0
    %1203 = vmatprep.subr.mxu0 0.0
    %1204 = vmatpush1.msra.mxu0 0.0
    %1205 = vmatprep.subr.mxu0 0.0
    %1206 = vmatpush1.msra.mxu0 0.0
    %1207 = vmatprep.subr.mxu0 0.0
    %1208 = vmatpush1.msra.mxu0 0.0
    %1209 = vmatprep.subr.mxu0 0.0
    %1210 = vmatpush1.msra.mxu0 0.0
    %1211 = vmatprep.subr.mxu0 0.0
    %1212 = vmatpush1.msra.mxu0 0.0
    %1213 = vmatprep.subr.mxu0 0.0
    %1214 = vmatpush1.msra.mxu0 0.0
    %1215 = vmatprep.subr.mxu0 0.0
    %1216 = vmatpush1.msra.mxu0 0.0
    %1217 = vmatprep.subr.mxu0 0.0
    %1218 = vmatpush1.msra.mxu0 0.0
    %1219 = vmatprep.subr.mxu0 0.0
    %1220 = vmatpush1.msra.mxu0 0.0
    %1221 = vmatprep.subr.mxu0 0.0
    %1222 = vmatpush1.msra.mxu0 0.0
    %1223 = vmatprep.subr.mxu0 0.0
    %1224 = vmatpush1.msra.mxu0 0.0
    %1225 = vmatprep.subr.mxu0 0.0
    %1226 = vmatpush1.msra.mxu0 0.0
    %1227 = vmatprep.subr.mxu0 0.0
    %1228 = vmatpush1.msra.mxu0 0.0
    %1229 = vmatprep.subr.mxu0 0.0
    %1230 = vmatpush1.msra.mxu0 0.0
    %1231 = vmatprep.subr.mxu0 0.0
    %1232 = vmatpush1.msra.mxu0 0.0
    %1233 = vmatprep.subr.mxu0 0.0
    %1234 = vmatpush1.msra.mxu0 0.0
    %1235 = vmatprep.subr.mxu0 0.0
    %1236 = vmatpush1.msra.mxu0 0.0
    %1237 = vmatprep.subr.mxu0 0.0
    %1238 = vmatpush1.msra.mxu0 0.0
    %1239 = vmatprep.subr.mxu0 0.0
    %1240 = vmatpush1.msra.mxu0 0.0
    %1241 = vmatprep.mubr.f32.mxu0 0.0
    %1242 = vmatmul.mubr.f32.gmra.mrb[0].mxu0 %v205
    %v1243 = vpop.f32.mrb[0].mxu0
    %v1244 = vadd.f32 0.0, %v1243
    %v1245 = vpop.f32.mrb[0].mxu0
    %1246 = vmatprep.mubr.f32.mxu0 0.0
    %1247 = vmatmul.mubr.f32.gmra.mrb[0].mxu0 %v208
    %v1248 = vpop.f32.mrb[0].mxu0
    %v1249 = vadd.f32 0.0, %v1248
    %v1250 = vpop.f32.mrb[0].mxu0
    %1251 = vmatprep.mubr.f32.mxu0 0.0
    %1252 = vmatmul.mubr.f32.gmra.mrb[0].mxu0 %v211
    %v1253 = vpop.f32.mrb[0].mxu0
    %v1254 = vadd.f32 0.0, %v1253
    %v1255 = vpop.f32.mrb[0].mxu0
    %1256 = vmatprep.mubr.f32.mxu0 0.0
    %1257 = vmatmul.mubr.f32.gmra.mrb[0].mxu0 %v214
    %v1258 = vpop.f32.mrb[0].mxu0
    %v1259 = vadd.f32 0.0, %v1258
    %v1260 = vpop.f32.mrb[0].mxu0
    %1261 = vdwg.mxu0
    %v1266 = vrot.slane %v1244, 2
    %v1267 = vrot.slane %v1249, 2
    %v1268 = vsel %vm500, %v1266, %v1267
    %v1269 = vrot.slane %v1254, 2
    %v1270 = vrot.slane %v1259, 2
    %v1271 = vsel %vm500, %v1269, %v1270
    %v1276 = vadd.f32 %v1170, %v1268
    %v1277 = vadd.f32 %v1171, %v1267
    %v1278 = vadd.f32 %v1172, %v1271
    %v1279 = vadd.f32 %v1173, %v1270
    %s1280 = scalar_lea.vmem %s6, 48
    %v1281 = vld [vmem:[%s1280] sm:$0xff]
    %v1282 = vld [vmem:[%s1280 + $0x8] sm:$0xff]
    %1283 = vmatprep.subr.mxu0 0.0
    %1284 = vmatpush1.msra.mxu0 %v1281
    %1285 = vmatprep.subr.mxu0 0.0
    %1286 = vmatpush1.msra.mxu0 %v1282
    %1287 = vmatprep.subr.mxu0 0.0
    %1288 = vmatpush1.msra.mxu0 0.0
    %1289 = vmatprep.subr.mxu0 0.0
    %1290 = vmatpush1.msra.mxu0 0.0
    %1291 = vmatprep.subr.mxu0 0.0
    %1292 = vmatpush1.msra.mxu0 0.0
    %1293 = vmatprep.subr.mxu0 0.0
    %1294 = vmatpush1.msra.mxu0 0.0
    %1295 = vmatprep.subr.mxu0 0.0
    %1296 = vmatpush1.msra.mxu0 0.0
    %1297 = vmatprep.subr.mxu0 0.0
    %1298 = vmatpush1.msra.mxu0 0.0
    %1299 = vmatprep.subr.mxu0 0.0
    %1300 = vmatpush1.msra.mxu0 0.0
    %1301 = vmatprep.subr.mxu0 0.0
    %1302 = vmatpush1.msra.mxu0 0.0
    %1303 = vmatprep.subr.mxu0 0.0
    %1304 = vmatpush1.msra.mxu0 0.0
    %1305 = vmatprep.subr.mxu0 0.0
    %1306 = vmatpush1.msra.mxu0 0.0
    %1307 = vmatprep.subr.mxu0 0.0
    %1308 = vmatpush1.msra.mxu0 0.0
    %1309 = vmatprep.subr.mxu0 0.0
    %1310 = vmatpush1.msra.mxu0 0.0
    %1311 = vmatprep.subr.mxu0 0.0
    %1312 = vmatpush1.msra.mxu0 0.0
    %1313 = vmatprep.subr.mxu0 0.0
    %1314 = vmatpush1.msra.mxu0 0.0
    %1315 = vmatprep.subr.mxu0 0.0
    %1316 = vmatpush1.msra.mxu0 0.0
    %1317 = vmatprep.subr.mxu0 0.0
    %1318 = vmatpush1.msra.mxu0 0.0
    %1319 = vmatprep.subr.mxu0 0.0
    %1320 = vmatpush1.msra.mxu0 0.0
    %1321 = vmatprep.subr.mxu0 0.0
    %1322 = vmatpush1.msra.mxu0 0.0
    %1323 = vmatprep.subr.mxu0 0.0
    %1324 = vmatpush1.msra.mxu0 0.0
    %1325 = vmatprep.subr.mxu0 0.0
    %1326 = vmatpush1.msra.mxu0 0.0
    %1327 = vmatprep.subr.mxu0 0.0
    %1328 = vmatpush1.msra.mxu0 0.0
    %1329 = vmatprep.subr.mxu0 0.0
    %1330 = vmatpush1.msra.mxu0 0.0
    %1331 = vmatprep.subr.mxu0 0.0
    %1332 = vmatpush1.msra.mxu0 0.0
    %1333 = vmatprep.subr.mxu0 0.0
    %1334 = vmatpush1.msra.mxu0 0.0
    %1335 = vmatprep.subr.mxu0 0.0
    %1336 = vmatpush1.msra.mxu0 0.0
    %1337 = vmatprep.subr.mxu0 0.0
    %1338 = vmatpush1.msra.mxu0 0.0
    %1339 = vmatprep.subr.mxu0 0.0
    %1340 = vmatpush1.msra.mxu0 0.0
    %1341 = vmatprep.subr.mxu0 0.0
    %1342 = vmatpush1.msra.mxu0 0.0
    %1343 = vmatprep.subr.mxu0 0.0
    %1344 = vmatpush1.msra.mxu0 0.0
    %1345 = vmatprep.subr.mxu0 0.0
    %1346 = vmatpush1.msra.mxu0 0.0
    %1347 = vmatprep.mubr.f32.mxu0 0.0
    %1348 = vmatmul.mubr.f32.gmra.mrb[0].mxu0 %v205
    %v1349 = vpop.f32.mrb[0].mxu0
    %v1350 = vadd.f32 0.0, %v1349
    %v1351 = vpop.f32.mrb[0].mxu0
    %1352 = vmatprep.mubr.f32.mxu0 0.0
    %1353 = vmatmul.mubr.f32.gmra.mrb[0].mxu0 %v208
    %v1354 = vpop.f32.mrb[0].mxu0
    %v1355 = vadd.f32 0.0, %v1354
    %v1356 = vpop.f32.mrb[0].mxu0
    %1357 = vmatprep.mubr.f32.mxu0 0.0
    %1358 = vmatmul.mubr.f32.gmra.mrb[0].mxu0 %v211
    %v1359 = vpop.f32.mrb[0].mxu0
    %v1360 = vadd.f32 0.0, %v1359
    %v1361 = vpop.f32.mrb[0].mxu0
    %1362 = vmatprep.mubr.f32.mxu0 0.0
    %1363 = vmatmul.mubr.f32.gmra.mrb[0].mxu0 %v214
    %v1364 = vpop.f32.mrb[0].mxu0
    %v1365 = vadd.f32 0.0, %v1364
    %v1366 = vpop.f32.mrb[0].mxu0
    %1367 = vdwg.mxu0
    %v1372 = vrot.slane %v1350, 3
    %v1373 = vrot.slane %v1355, 3
    %v1374 = vsel %vm936, %v1372, %v1373
    %v1375 = vrot.slane %v1360, 3
    %v1376 = vrot.slane %v1365, 3
    %v1377 = vsel %vm936, %v1375, %v1376
    %v1382 = vadd.f32 %v1276, %v1374
    %v1383 = vadd.f32 %v1277, %v1373
    %v1384 = vadd.f32 %v1278, %v1377
    %v1385 = vadd.f32 %v1279, %v1376
    %s1386 = scalar_lea.vmem %s6, 64
    %v1387 = vld [vmem:[%s1386] sm:$0xff]
    %v1388 = vld [vmem:[%s1386 + $0x8] sm:$0xff]
    %1389 = vmatprep.subr.mxu0 0.0
    %1390 = vmatpush1.msra.mxu0 %v1387
    %1391 = vmatprep.subr.mxu0 0.0
    %1392 = vmatpush1.msra.mxu0 %v1388
    %1393 = vmatprep.subr.mxu0 0.0
    %1394 = vmatpush1.msra.mxu0 0.0
    %1395 = vmatprep.subr.mxu0 0.0
    %1396 = vmatpush1.msra.mxu0 0.0
    %1397 = vmatprep.subr.mxu0 0.0
    %1398 = vmatpush1.msra.mxu0 0.0
    %1399 = vmatprep.subr.mxu0 0.0
    %1400 = vmatpush1.msra.mxu0 0.0
    %1401 = vmatprep.subr.mxu0 0.0
    %1402 = vmatpush1.msra.mxu0 0.0
    %1403 = vmatprep.subr.mxu0 0.0
    %1404 = vmatpush1.msra.mxu0 0.0
    %1405 = vmatprep.subr.mxu0 0.0
    %1406 = vmatpush1.msra.mxu0 0.0
    %1407 = vmatprep.subr.mxu0 0.0
    %1408 = vmatpush1.msra.mxu0 0.0
    %1409 = vmatprep.subr.mxu0 0.0
    %1410 = vmatpush1.msra.mxu0 0.0
    %1411 = vmatprep.subr.mxu0 0.0
    %1412 = vmatpush1.msra.mxu0 0.0
    %1413 = vmatprep.subr.mxu0 0.0
    %1414 = vmatpush1.msra.mxu0 0.0
    %1415 = vmatprep.subr.mxu0 0.0
    %1416 = vmatpush1.msra.mxu0 0.0
    %1417 = vmatprep.subr.mxu0 0.0
    %1418 = vmatpush1.msra.mxu0 0.0
    %1419 = vmatprep.subr.mxu0 0.0
    %1420 = vmatpush1.msra.mxu0 0.0
    %1421 = vmatprep.subr.mxu0 0.0
    %1422 = vmatpush1.msra.mxu0 0.0
    %1423 = vmatprep.subr.mxu0 0.0
    %1424 = vmatpush1.msra.mxu0 0.0
    %1425 = vmatprep.subr.mxu0 0.0
    %1426 = vmatpush1.msra.mxu0 0.0
    %1427 = vmatprep.subr.mxu0 0.0
    %1428 = vmatpush1.msra.mxu0 0.0
    %1429 = vmatprep.subr.mxu0 0.0
    %1430 = vmatpush1.msra.mxu0 0.0
    %1431 = vmatprep.subr.mxu0 0.0
    %1432 = vmatpush1.msra.mxu0 0.0
    %1433 = vmatprep.subr.mxu0 0.0
    %1434 = vmatpush1.msra.mxu0 0.0
    %1435 = vmatprep.subr.mxu0 0.0
    %1436 = vmatpush1.msra.mxu0 0.0
    %1437 = vmatprep.subr.mxu0 0.0
    %1438 = vmatpush1.msra.mxu0 0.0
    %1439 = vmatprep.subr.mxu0 0.0
    %1440 = vmatpush1.msra.mxu0 0.0
    %1441 = vmatprep.subr.mxu0 0.0
    %1442 = vmatpush1.msra.mxu0 0.0
    %1443 = vmatprep.subr.mxu0 0.0
    %1444 = vmatpush1.msra.mxu0 0.0
    %1445 = vmatprep.subr.mxu0 0.0
    %1446 = vmatpush1.msra.mxu0 0.0
    %1447 = vmatprep.subr.mxu0 0.0
    %1448 = vmatpush1.msra.mxu0 0.0
    %1449 = vmatprep.subr.mxu0 0.0
    %1450 = vmatpush1.msra.mxu0 0.0
    %1451 = vmatprep.subr.mxu0 0.0
    %1452 = vmatpush1.msra.mxu0 0.0
    %1453 = vmatprep.mubr.f32.mxu0 0.0
    %1454 = vmatmul.mubr.f32.gmra.mrb[0].mxu0 %v205
    %v1455 = vpop.f32.mrb[0].mxu0
    %v1456 = vadd.f32 0.0, %v1455
    %v1457 = vpop.f32.mrb[0].mxu0
    %1458 = vmatprep.mubr.f32.mxu0 0.0
    %1459 = vmatmul.mubr.f32.gmra.mrb[0].mxu0 %v208
    %v1460 = vpop.f32.mrb[0].mxu0
    %v1461 = vadd.f32 0.0, %v1460
    %v1462 = vpop.f32.mrb[0].mxu0
    %1463 = vmatprep.mubr.f32.mxu0 0.0
    %1464 = vmatmul.mubr.f32.gmra.mrb[0].mxu0 %v211
    %v1465 = vpop.f32.mrb[0].mxu0
    %v1466 = vadd.f32 0.0, %v1465
    %v1467 = vpop.f32.mrb[0].mxu0
    %1468 = vmatprep.mubr.f32.mxu0 0.0
    %1469 = vmatmul.mubr.f32.gmra.mrb[0].mxu0 %v214
    %v1470 = vpop.f32.mrb[0].mxu0
    %v1471 = vadd.f32 0.0, %v1470
    %v1472 = vpop.f32.mrb[0].mxu0
    %1473 = vdwg.mxu0
    %vm1478 = vcmask 1043456
    %v1479 = vrot.slane %v1456, 4
    %v1480 = vrot.slane %v1461, 4
    %v1481 = vsel %vm1478, %v1479, %v1480
    %v1482 = vrot.slane %v1466, 4
    %v1483 = vrot.slane %v1471, 4
    %v1484 = vsel %vm1478, %v1482, %v1483
    %v1489 = vadd.f32 %v1382, %v1481
    %v1490 = vadd.f32 %v1383, %v1480
    %v1491 = vadd.f32 %v1384, %v1484
    %v1492 = vadd.f32 %v1385, %v1483
    %v1493 = vsel %vm203, %v1489, -inf
    %vm1494 = vcmask 125952
    %v1495 = vsel %vm1494, %v1490, -inf
    %v1496 = vmax.f32 %v1493, %v1495
    %v1497 = vrot.slane %v1496, 4
    %v1498 = vmax.f32 %v1496, %v1497
    %v1499 = vrot.slane %v1498, 2
    %v1500 = vmax.f32 %v1498, %v1499
    %v1501 = vrot.slane %v1500, 1
    %v1502 = vmax.f32 %v1500, %v1501
    %v1503 = vsel %vm203, %v1491, -inf
    %v1504 = vsel %vm1494, %v1492, -inf
    %v1505 = vmax.f32 %v1503, %v1504
    %v1506 = vrot.slane %v1505, 4
    %v1507 = vmax.f32 %v1505, %v1506
    %v1508 = vrot.slane %v1507, 2
    %v1509 = vmax.f32 %v1507, %v1508
    %v1510 = vrot.slane %v1509, 1
    %v1511 = vmax.f32 %v1509, %v1510
    %v1512 = vld [vmem:[%s7] sm:$0x1]
    %v1514 = vlaneseq
    %v1515 = vshrl.u32 %v1514, 7
    %v1516 = vsub.s32 0, %v1515
    %v1517 = vrot.slane %v1512, %v1516
    %v1519 = vadd.f32 %v1502, %v1517
    %v1520 = vadd.f32 %v1511, %v1517
    %v1521 = vmax.f32 %v1519, 0.0
    %v1522 = vmax.f32 %v1520, 0.0
    %v1523 = vld [vmem:[%s8] sm:$0xff]
    %v1524 = vld [vmem:[%s8 + $0x8] sm:$0xff]
    %v1525 = vld [vmem:[%s8 + $0x10] sm:$0xff]
    %v1526 = vld [vmem:[%s8 + $0x18] sm:$0xff]
    %v1529 = vrot.slane %v980, 7
    %vm1530 = vcmask 1041409
    %v1531 = vsel %vm1530, %v1529, %v979
    %v1532 = vsel %vm203, %v1531, 0
    %1534 = vmatprep.subr.mxu0 0.0
    %1535 = vmatpush1.msra.mxu0 %v1525
    %1536 = vmatprep.subr.mxu0 0.0
    %1537 = vmatpush1.msra.mxu0 %v1526
    %1538 = vmatprep.subr.mxu0 0.0
    %1539 = vmatpush1.msra.mxu0 0.0
    %1540 = vmatprep.subr.mxu0 0.0
    %1541 = vmatpush1.msra.mxu0 0.0
    %1542 = vmatprep.subr.mxu0 0.0
    %1543 = vmatpush1.msra.mxu0 0.0
    %1544 = vmatprep.subr.mxu0 0.0
    %1545 = vmatpush1.msra.mxu0 0.0
    %1546 = vmatprep.subr.mxu0 0.0
    %1547 = vmatpush1.msra.mxu0 0.0
    %1548 = vmatprep.subr.mxu0 0.0
    %1549 = vmatpush1.msra.mxu0 0.0
    %1550 = vmatprep.subr.mxu0 0.0
    %1551 = vmatpush1.msra.mxu0 0.0
    %1552 = vmatprep.subr.mxu0 0.0
    %1553 = vmatpush1.msra.mxu0 0.0
    %1554 = vmatprep.subr.mxu0 0.0
    %1555 = vmatpush1.msra.mxu0 0.0
    %1556 = vmatprep.subr.mxu0 0.0
    %1557 = vmatpush1.msra.mxu0 0.0
    %1558 = vmatprep.subr.mxu0 0.0
    %1559 = vmatpush1.msra.mxu0 0.0
    %1560 = vmatprep.subr.mxu0 0.0
    %1561 = vmatpush1.msra.mxu0 0.0
    %1562 = vmatprep.subr.mxu0 0.0
    %1563 = vmatpush1.msra.mxu0 0.0
    %1564 = vmatprep.subr.mxu0 0.0
    %1565 = vmatpush1.msra.mxu0 0.0
    %1566 = vmatprep.subr.mxu0 0.0
    %1567 = vmatpush1.msra.mxu0 0.0
    %1568 = vmatprep.subr.mxu0 0.0
    %1569 = vmatpush1.msra.mxu0 0.0
    %1570 = vmatprep.subr.mxu0 0.0
    %1571 = vmatpush1.msra.mxu0 0.0
    %1572 = vmatprep.subr.mxu0 0.0
    %1573 = vmatpush1.msra.mxu0 0.0
    %1574 = vmatprep.subr.mxu0 0.0
    %1575 = vmatpush1.msra.mxu0 0.0
    %1576 = vmatprep.subr.mxu0 0.0
    %1577 = vmatpush1.msra.mxu0 0.0
    %1578 = vmatprep.subr.mxu0 0.0
    %1579 = vmatpush1.msra.mxu0 0.0
    %1580 = vmatprep.subr.mxu0 0.0
    %1581 = vmatpush1.msra.mxu0 0.0
    %1582 = vmatprep.subr.mxu0 0.0
    %1583 = vmatpush1.msra.mxu0 0.0
    %1584 = vmatprep.subr.mxu0 0.0
    %1585 = vmatpush1.msra.mxu0 0.0
    %1586 = vmatprep.subr.mxu0 0.0
    %1587 = vmatpush1.msra.mxu0 0.0
    %1588 = vmatprep.subr.mxu0 0.0
    %1589 = vmatpush1.msra.mxu0 0.0
    %1590 = vmatprep.subr.mxu0 0.0
    %1591 = vmatpush1.msra.mxu0 0.0
    %1592 = vmatprep.subr.mxu0 0.0
    %1593 = vmatpush1.msra.mxu0 0.0
    %1594 = vmatprep.subr.mxu0 0.0
    %1595 = vmatpush1.msra.mxu0 0.0
    %1596 = vmatprep.subr.mxu0 0.0
    %1597 = vmatpush1.msra.mxu0 0.0
    %1598 = vmatprep.mubr.f32.mxu0 0.0
    %1599 = vmatmul.mubr.f32.gmra.mrb[0].mxu0 %v1532
    %v1600 = vpop.f32.mrb[0].mxu0
    %v1601 = vadd.f32 0.0, %v1600
    %v1602 = vpop.f32.mrb[0].mxu0
    %1603 = vdwg.mxu0
    %v1606 = vrot.slane %v544, 7
    %v1607 = vsel %vm1530, %v1606, %v543
    %v1608 = vsel %vm203, %v1607, 0
    %1610 = vmatprep.subr.mxu0 0.0
    %1611 = vmatpush1.msra.mxu0 %v1523
    %1612 = vmatprep.subr.mxu0 0.0
    %1613 = vmatpush1.msra.mxu0 %v1524
    %1614 = vmatprep.subr.mxu0 0.0
    %1615 = vmatpush1.msra.mxu0 0.0
    %1616 = vmatprep.subr.mxu0 0.0
    %1617 = vmatpush1.msra.mxu0 0.0
    %1618 = vmatprep.subr.mxu0 0.0
    %1619 = vmatpush1.msra.mxu0 0.0
    %1620 = vmatprep.subr.mxu0 0.0
    %1621 = vmatpush1.msra.mxu0 0.0
    %1622 = vmatprep.subr.mxu0 0.0
    %1623 = vmatpush1.msra.mxu0 0.0
    %1624 = vmatprep.subr.mxu0 0.0
    %1625 = vmatpush1.msra.mxu0 0.0
    %1626 = vmatprep.subr.mxu0 0.0
    %1627 = vmatpush1.msra.mxu0 0.0
    %1628 = vmatprep.subr.mxu0 0.0
    %1629 = vmatpush1.msra.mxu0 0.0
    %1630 = vmatprep.subr.mxu0 0.0
    %1631 = vmatpush1.msra.mxu0 0.0
    %1632 = vmatprep.subr.mxu0 0.0
    %1633 = vmatpush1.msra.mxu0 0.0
    %1634 = vmatprep.subr.mxu0 0.0
    %1635 = vmatpush1.msra.mxu0 0.0
    %1636 = vmatprep.subr.mxu0 0.0
    %1637 = vmatpush1.msra.mxu0 0.0
    %1638 = vmatprep.subr.mxu0 0.0
    %1639 = vmatpush1.msra.mxu0 0.0
    %1640 = vmatprep.subr.mxu0 0.0
    %1641 = vmatpush1.msra.mxu0 0.0
    %1642 = vmatprep.subr.mxu0 0.0
    %1643 = vmatpush1.msra.mxu0 0.0
    %1644 = vmatprep.subr.mxu0 0.0
    %1645 = vmatpush1.msra.mxu0 0.0
    %1646 = vmatprep.subr.mxu0 0.0
    %1647 = vmatpush1.msra.mxu0 0.0
    %1648 = vmatprep.subr.mxu0 0.0
    %1649 = vmatpush1.msra.mxu0 0.0
    %1650 = vmatprep.subr.mxu0 0.0
    %1651 = vmatpush1.msra.mxu0 0.0
    %1652 = vmatprep.subr.mxu0 0.0
    %1653 = vmatpush1.msra.mxu0 0.0
    %1654 = vmatprep.subr.mxu0 0.0
    %1655 = vmatpush1.msra.mxu0 0.0
    %1656 = vmatprep.subr.mxu0 0.0
    %1657 = vmatpush1.msra.mxu0 0.0
    %1658 = vmatprep.subr.mxu0 0.0
    %1659 = vmatpush1.msra.mxu0 0.0
    %1660 = vmatprep.subr.mxu0 0.0
    %1661 = vmatpush1.msra.mxu0 0.0
    %1662 = vmatprep.subr.mxu0 0.0
    %1663 = vmatpush1.msra.mxu0 0.0
    %1664 = vmatprep.subr.mxu0 0.0
    %1665 = vmatpush1.msra.mxu0 0.0
    %1666 = vmatprep.subr.mxu0 0.0
    %1667 = vmatpush1.msra.mxu0 0.0
    %1668 = vmatprep.subr.mxu0 0.0
    %1669 = vmatpush1.msra.mxu0 0.0
    %1670 = vmatprep.subr.mxu0 0.0
    %1671 = vmatpush1.msra.mxu0 0.0
    %1672 = vmatprep.subr.mxu0 0.0
    %1673 = vmatpush1.msra.mxu0 0.0
    %1674 = vmatprep.mubr.f32.mxu0 0.0
    %1675 = vmatmul.mubr.f32.gmra.mrb[0].mxu0 %v1608
    %v1676 = vpop.f32.mrb[0].mxu0
    %v1677 = vadd.f32 %v1601, %v1676
    %v1678 = vpop.f32.mrb[0].mxu0
    %1679 = vdwg.mxu0
    %v1680 = vld [vmem:[%s8 + $0x20] sm:$0xff]
    %v1681 = vld [vmem:[%s8 + $0x28] sm:$0xff]
    %v1684 = vrot.slane %v1522, 7
    %v1685 = vsel %vm1530, %v1684, %v1521
    %v1686 = vsel %vm203, %v1685, 0
    %1688 = vmatprep.subr.mxu0 0.0
    %1689 = vmatpush1.msra.mxu0 %v1680
    %1690 = vmatprep.subr.mxu0 0.0
    %1691 = vmatpush1.msra.mxu0 %v1681
    %1692 = vmatprep.subr.mxu0 0.0
    %1693 = vmatpush1.msra.mxu0 0.0
    %1694 = vmatprep.subr.mxu0 0.0
    %1695 = vmatpush1.msra.mxu0 0.0
    %1696 = vmatprep.subr.mxu0 0.0
    %1697 = vmatpush1.msra.mxu0 0.0
    %1698 = vmatprep.subr.mxu0 0.0
    %1699 = vmatpush1.msra.mxu0 0.0
    %1700 = vmatprep.subr.mxu0 0.0
    %1701 = vmatpush1.msra.mxu0 0.0
    %1702 = vmatprep.subr.mxu0 0.0
    %1703 = vmatpush1.msra.mxu0 0.0
    %1704 = vmatprep.subr.mxu0 0.0
    %1705 = vmatpush1.msra.mxu0 0.0
    %1706 = vmatprep.subr.mxu0 0.0
    %1707 = vmatpush1.msra.mxu0 0.0
    %1708 = vmatprep.subr.mxu0 0.0
    %1709 = vmatpush1.msra.mxu0 0.0
    %1710 = vmatprep.subr.mxu0 0.0
    %1711 = vmatpush1.msra.mxu0 0.0
    %1712 = vmatprep.subr.mxu0 0.0
    %1713 = vmatpush1.msra.mxu0 0.0
    %1714 = vmatprep.subr.mxu0 0.0
    %1715 = vmatpush1.msra.mxu0 0.0
    %1716 = vmatprep.subr.mxu0 0.0
    %1717 = vmatpush1.msra.mxu0 0.0
    %1718 = vmatprep.subr.mxu0 0.0
    %1719 = vmatpush1.msra.mxu0 0.0
    %1720 = vmatprep.subr.mxu0 0.0
    %1721 = vmatpush1.msra.mxu0 0.0
    %1722 = vmatprep.subr.mxu0 0.0
    %1723 = vmatpush1.msra.mxu0 0.0
    %1724 = vmatprep.subr.mxu0 0.0
    %1725 = vmatpush1.msra.mxu0 0.0
    %1726 = vmatprep.subr.mxu0 0.0
    %1727 = vmatpush1.msra.mxu0 0.0
    %1728 = vmatprep.subr.mxu0 0.0
    %1729 = vmatpush1.msra.mxu0 0.0
    %1730 = vmatprep.subr.mxu0 0.0
    %1731 = vmatpush1.msra.mxu0 0.0
    %1732 = vmatprep.subr.mxu0 0.0
    %1733 = vmatpush1.msra.mxu0 0.0
    %1734 = vmatprep.subr.mxu0 0.0
    %1735 = vmatpush1.msra.mxu0 0.0
    %1736 = vmatprep.subr.mxu0 0.0
    %1737 = vmatpush1.msra.mxu0 0.0
    %1738 = vmatprep.subr.mxu0 0.0
    %1739 = vmatpush1.msra.mxu0 0.0
    %1740 = vmatprep.subr.mxu0 0.0
    %1741 = vmatpush1.msra.mxu0 0.0
    %1742 = vmatprep.subr.mxu0 0.0
    %1743 = vmatpush1.msra.mxu0 0.0
    %1744 = vmatprep.subr.mxu0 0.0
    %1745 = vmatpush1.msra.mxu0 0.0
    %1746 = vmatprep.subr.mxu0 0.0
    %1747 = vmatpush1.msra.mxu0 0.0
    %1748 = vmatprep.subr.mxu0 0.0
    %1749 = vmatpush1.msra.mxu0 0.0
    %1750 = vmatprep.subr.mxu0 0.0
    %1751 = vmatpush1.msra.mxu0 0.0
    %1752 = vmatprep.mubr.f32.mxu0 0.0
    %1753 = vmatmul.mubr.f32.gmra.mrb[0].mxu0 %v1686
    %v1754 = vpop.f32.mrb[0].mxu0
    %v1755 = vadd.f32 0.0, %v1754
    %v1756 = vpop.f32.mrb[0].mxu0
    %1757 = vdwg.mxu0
    %v1758 = vadd.f32 %v1677, %v1755
    %v1759 = vld [vmem:[%s9] sm:$0x1]
    %v1761 = vlaneseq
    %v1762 = vshrl.u32 %v1761, 7
    %v1763 = vsub.s32 0, %v1762
    %v1764 = vrot.slane %v1759, %v1763
    %v1766 = vadd.f32 %v1758, %v1764
    %v1767 = vxor.u32 %v1766, 2147483648
    %v1768 = vmul.f32 %v1767, 1.442695
    %v1769 = vpow.pop %v1768
    %v1770 = vadd.f32 %v1769, 1.0
    %v1771 = vrcp.pop %v1770
    %v1772 = vmul.f32 1.0, %v1771
    %vm1773 = vcmask 25600
    %1774 = vst.msk [vmem:[#allocation7] sm:$0x3] %vm1773, %v1772
    // Predicated region
    $region50: #{textcnn_forward.1} parent=1 // pred_check
      _
    $region51: #{textcnn_forward.1} parent=1 // pred_check_branch
      %1776 = sbr.rel (0) target = $region53
    $region52: #{textcnn_forward.1} parent=1 // pred_region
      %s1778 = ssub.s32 32, 32
      %1779 = vsyncadd [#allocation4], %s1778
      %s1781 = sshll.u32 [#allocation7], 4
      %s1782 = int_to_ptr.vmem [resolvable:$true] %s1781
      %1784 = dma.vmem_to_hbm [thread:$0]  %s1782, 32, %s10, [#allocation4]
    $region53: #{textcnn_forward.1} parent=1 // pred_fallthru
      _
    // Predicated region
    $region54: #{textcnn_forward.1} parent=1 // pred_check
      _
    $region55: #{textcnn_forward.1} parent=1 // pred_check_branch
      %1786 = sbr.rel (0) target = $region57
    $region56: #{textcnn_forward.1} parent=1 // pred_region
      %1787 = dma.done [#allocation4], 32
    $region57: #{textcnn_forward.1} parent=1 // pred_fallthru
      _
    %1788 = vsyncpa [#allocation3], 1
    %1789 = vsyncpa [#allocation6], 1
    %1790 = vsyncpa [#allocation4], 1

</llo_original>
